<compile_context>
chip_gen: v7x
topology: tpu7x:2x2x1
jax: 0.10.0
libtpu: 0.0.40
codegen_flags: <defaults>
</compile_context>

<pallas_src>
import functools

import jax
import jax.numpy as jnp
from jax.experimental import pallas as pl
from jax.experimental.pallas import tpu as pltpu


def _adaptive_embed_kernel(cutoff_starts, vocab_sizes, n_clusters, ids_ref, *refs):
    """refs = (fused_0, fused_1, ..., fused_{n-1}, out_ref).

    fused_i has shape (vocab_i, d_model), bf16, with proj_i and emb_scale already folded in.
    """
    out_ref = refs[-1]
    fused_refs = refs[:-1]

    ids = ids_ref[...]                        # (TB, 1) int32
    tb = ids.shape[0]
    max_vocab = max(vocab_sizes)

    # One un-offset iota shared by all clusters; per-cluster use is a static lane slice.
    # The cutoff offset is applied to the (TB, 1) ids column instead of the full
    # (TB, vocab_i) iota -> one fewer full-tile VPU pass per cluster per grid step.
    iota = jax.lax.broadcasted_iota(jnp.int32, (tb, max_vocab), 1)

    acc = None
    for i in range(n_clusters):
        fused = fused_refs[i][...]            # (vocab_i, d_model) bf16
        vocab_i = vocab_sizes[i]
        start = cutoff_starts[i]

        # One-hot of (id - start) restricted to [0, vocab_i): rows whose id falls outside
        # [start, start + vocab_i) are all-zero, reproducing mask_i / index_copy_ (clusters
        # are disjoint).  Compare runs in int32 on the VPU; bf16 cast at the MXU input.
        local = ids - start                                   # (TB, 1)
        onehot = (local == iota[:, :vocab_i]).astype(jnp.bfloat16)   # (TB, vocab_i)

        part = jnp.dot(onehot, fused, preferred_element_type=jnp.float32)   # (TB, d_model) f32
        acc = part if acc is None else acc + part

    # Single store per grid step (f32 accumulation, cast only here if out dtype is narrower).
    out_ref[...] = acc.astype(out_ref.dtype)


def _preprocess_tables(emb_tables, emb_projs, d_model):
    """Fuse projection + emb_scale into each table: (vocab_i, d_model) bf16.

    The matmul and scale are done in f32 and only the final fused table is cast to bf16,
    so numerics are at least as good as the previous two-step bf16 path.
    """
    emb_scale = float(d_model) ** 0.5
    fused = []
    for tab, proj in zip(emb_tables, emb_projs):
        f = (tab.astype(jnp.float32) @ proj.astype(jnp.float32).T) * emb_scale
        fused.append(f.astype(jnp.bfloat16))
    return fused


def adaptive_embedding_pallas(inputs, emb_tables, emb_projs, cutoffs_ends,
                              d_model, *, token_block=256):
    """inputs: int array of arbitrary shape; returns inputs.shape + (d_model,) in f32.

    token_block=256 is v7x-friendly; on v5e/v6e 512-1024 amortizes per-step overhead further
    (raise vmem_limit_bytes in CompilerParams once tables grow beyond toy size).
    """
    n_clusters = len(emb_tables)

    flat = inputs.reshape(-1).astype(jnp.int32)
    n_tokens = flat.shape[0]
    pad = (-n_tokens) % token_block
    if pad:
        flat = jnp.pad(flat, (0, pad))   # padded ids (0) hit cluster 0 harmlessly; sliced off below
    n_padded = flat.shape[0]
    ids2d = flat.reshape(n_padded, 1)

    cutoff_starts = tuple(int(c) for c in cutoffs_ends[:-1])
    vocab_sizes = tuple(int(t.shape[0]) for t in emb_tables)

    fused_tables = _preprocess_tables(emb_tables, emb_projs, d_model)

    kernel = functools.partial(_adaptive_embed_kernel,
                               cutoff_starts, vocab_sizes, n_clusters)

    # Fused tables: full-array blocks with constant index map -> DMA'd once and kept
    # VMEM-resident across the grid; single-buffered since the block never changes.
    table_specs = [
        pl.BlockSpec(t.shape, lambda i: (0, 0), pipeline_mode=pl.Buffered(1))
        for t in fused_tables
    ]

    out_flat = pl.pallas_call(
        kernel,
        out_shape=jax.ShapeDtypeStruct((n_padded, d_model), jnp.float32),
        grid=(n_padded // token_block,),
        in_specs=[pl.BlockSpec((token_block, 1), lambda i: (i, 0))] + table_specs,
        out_specs=pl.BlockSpec((token_block, d_model), lambda i: (i, 0)),
        compiler_params=pltpu.CompilerParams(
            dimension_semantics=("parallel",)),
    )(ids2d, *fused_tables)

    if pad:
        out_flat = out_flat[:n_tokens]
    return out_flat.reshape(inputs.shape + (d_model,))


def adaptive_embedding_ref_f32(inputs, emb_tables, emb_projs, cutoffs_ends, d_model):
    """Pure-JAX f32 mirror of the PyTorch forward (div_val > 1 branch)."""
    emb_scale = float(d_model) ** 0.5
    flat = inputs.reshape(-1).astype(jnp.int32)
    out = jnp.zeros((flat.shape[0], d_model), jnp.float32)
    for i, (tab, proj) in enumerate(zip(emb_tables, emb_projs)):
        start, end = cutoffs_ends[i], cutoffs_ends[i + 1]
        mask = (flat >= start) & (flat < end)
        local = jnp.clip(flat - start, 0, tab.shape[0] - 1)
        e = tab[local] @ proj.T
        out = out + jnp.where(mask[:, None], e, 0.0)
    return (out * emb_scale).reshape(inputs.shape + (d_model,))


def adaptive_embedding_ref_quantized(inputs, emb_tables, emb_projs, cutoffs_ends, d_model):
    """Same math as the kernel (fused bf16 tables, scale folded) for a tight check."""
    fused = _preprocess_tables(emb_tables, emb_projs, d_model)
    flat = inputs.reshape(-1).astype(jnp.int32)
    out = jnp.zeros((flat.shape[0], d_model), jnp.float32)
    for i, tab in enumerate(fused):
        start, end = cutoffs_ends[i], cutoffs_ends[i + 1]
        mask = (flat >= start) & (flat < end)
        local = jnp.clip(flat - start, 0, tab.shape[0] - 1)
        e = tab.astype(jnp.float32)[local]
        out = out + jnp.where(mask[:, None], e, 0.0)
    return out.reshape(inputs.shape + (d_model,))


if __name__ == "__main__":
    # Module config (div_val > 1 -> adaptive path).  d_model = 128 keeps the output tile and
    # every fused-table N lane-dense; cluster sizes of 128 keep all block dims TPU-friendly.
    vocab_size = 384
    d_embed = 128
    d_model = 128
    cutoffs = [128, 256]
    div_val = 2

    cutoffs_full = cutoffs + [vocab_size]       # [128, 256, 384]
    cutoffs_ends = [0] + cutoffs_full           # [0, 128, 256, 384]

    key = jax.random.PRNGKey(0)
    emb_tables, emb_projs = [], []
    # NOTE: the PyTorch module zero-inits emb_projs; deterministic random init here so the
    # kernel output is non-trivial to verify.
    for i in range(len(cutoffs_full)):
        d_embed_i = d_embed // div_val ** i
        d_out_i = cutoffs_ends[i + 1] - cutoffs_ends[i]
        key, k1, k2 = jax.random.split(key, 3)
        emb_tables.append(jax.random.normal(k1, (d_out_i, d_embed_i), jnp.float32))
        emb_projs.append(0.1 * jax.random.normal(k2, (d_model, d_embed_i), jnp.float32))

    # Token ids, shape (batch=8, seq=512) -> 4096 tokens -> 16 grid steps of 256, i.e. 8
    # steady-state iterations per TensorCore on v7x megacore (and 16 on v5e/v6e).
    key, ki = jax.random.split(key)
    inputs = jax.random.randint(ki, (8, 512), 0, vocab_size, dtype=jnp.int32)

    out = adaptive_embedding_pallas(inputs, emb_tables, emb_projs,
                                    cutoffs_ends, d_model)
    out = jax.block_until_ready(out)
    assert out.shape == inputs.shape + (d_model,)

    # Tight check: reference consumes the exact fused bf16 tables the kernel uses, so the
    # one-hot dot (one selected row per token) should agree to f32 accuracy.
    ref_q = adaptive_embedding_ref_quantized(inputs, emb_tables, emb_projs,
                                             cutoffs_ends, d_model)
    assert jnp.allclose(out, ref_q, atol=1e-3, rtol=1e-3), "mismatch vs bf16-consistent reference"

    # Loose check vs the full-f32 PyTorch-equivalent forward (difference is only the single
    # bf16 rounding of the fused table).
    ref = adaptive_embedding_ref_f32(inputs, emb_tables, emb_projs,
                                     cutoffs_ends, d_model)
    assert jnp.allclose(out, ref, atol=0.5, rtol=5e-2), "mismatch vs f32 reference"

    print("KERNEL_OK")
</pallas_src>

<mosaic_0001>
module attributes {stable_mosaic.version = 11 : i64} {
  func.func @_adaptive_embed_kernel(%arg0: i32, %arg1: memref<256x1xi32, #tpu.memory_space<vmem>>, %arg2: memref<128x128xbf16, #tpu.memory_space<vmem>>, %arg3: memref<128x128xbf16, #tpu.memory_space<vmem>>, %arg4: memref<128x128xbf16, #tpu.memory_space<vmem>>, %arg5: memref<256x128xf32, #tpu.memory_space<vmem>>) attributes {dimension_semantics = [#tpu.dimension_semantics<parallel>], iteration_bounds = array<i64: 16>, scalar_prefetch = 0 : i64, scratch_operands = 0 : i64, tpu.core_type = #tpu.core_type<tc>, window_params = [{transform_indices = @transform_0, window_bounds = array<i64: 256, 1>}, {pipeline_mode = #tpu.pipeline_mode<synchronous>, transform_indices = @transform_1, window_bounds = array<i64: 128, 128>}, {pipeline_mode = #tpu.pipeline_mode<synchronous>, transform_indices = @transform_2, window_bounds = array<i64: 128, 128>}, {pipeline_mode = #tpu.pipeline_mode<synchronous>, transform_indices = @transform_3, window_bounds = array<i64: 128, 128>}, {transform_indices = @transform_4, window_bounds = array<i64: 256, 128>}]} {
    %c0 = arith.constant 0 : index
    %c0_0 = arith.constant 0 : index
    %0 = vector.load %arg1[%c0, %c0_0] : memref<256x1xi32, #tpu.memory_space<vmem>>, vector<256x1xi32>
    %1 = tpu.iota {dimensions = array<i32: 1>} : vector<256x128xi32>
    %c0_1 = arith.constant 0 : index
    %c0_2 = arith.constant 0 : index
    %2 = vector.load %arg2[%c0_1, %c0_2] : memref<128x128xbf16, #tpu.memory_space<vmem>>, vector<128x128xbf16>
    %c0_i32 = arith.constant 0 : i32
    %3 = vector.broadcast %c0_i32 : i32 to vector<256x1xi32>
    %4 = arith.subi %0, %3 : vector<256x1xi32>
    %5 = vector.broadcast %4 : vector<256x1xi32> to vector<256x128xi32>
    %6 = arith.cmpi eq, %5, %1 : vector<256x128xi32>
    %7 = arith.extui %6 : vector<256x128xi1> to vector<256x128xi32>
    %8 = arith.sitofp %7 : vector<256x128xi32> to vector<256x128xf32>
    %9 = arith.truncf %8 : vector<256x128xf32> to vector<256x128xbf16>
    %cst = arith.constant dense<0.000000e+00> : vector<256x128xf32>
    %10 = tpu.matmul %9, %2, %cst {dimension_numbers = #tpu.dot_dimension_numbers<[1], [0], [0], [1], [0, 0, 1, 1], [], []>} : vector<256x128xbf16>, vector<128x128xbf16>, vector<256x128xf32> -> vector<256x128xf32>
    %c0_3 = arith.constant 0 : index
    %c0_4 = arith.constant 0 : index
    %11 = vector.load %arg3[%c0_3, %c0_4] : memref<128x128xbf16, #tpu.memory_space<vmem>>, vector<128x128xbf16>
    %c128_i32 = arith.constant 128 : i32
    %12 = vector.broadcast %c128_i32 : i32 to vector<256x1xi32>
    %13 = arith.subi %0, %12 : vector<256x1xi32>
    %14 = vector.broadcast %13 : vector<256x1xi32> to vector<256x128xi32>
    %15 = arith.cmpi eq, %14, %1 : vector<256x128xi32>
    %16 = arith.extui %15 : vector<256x128xi1> to vector<256x128xi32>
    %17 = arith.sitofp %16 : vector<256x128xi32> to vector<256x128xf32>
    %18 = arith.truncf %17 : vector<256x128xf32> to vector<256x128xbf16>
    %cst_5 = arith.constant dense<0.000000e+00> : vector<256x128xf32>
    %19 = tpu.matmul %18, %11, %cst_5 {dimension_numbers = #tpu.dot_dimension_numbers<[1], [0], [0], [1], [0, 0, 1, 1], [], []>} : vector<256x128xbf16>, vector<128x128xbf16>, vector<256x128xf32> -> vector<256x128xf32>
    %20 = arith.addf %10, %19 : vector<256x128xf32>
    %c0_6 = arith.constant 0 : index
    %c0_7 = arith.constant 0 : index
    %21 = vector.load %arg4[%c0_6, %c0_7] : memref<128x128xbf16, #tpu.memory_space<vmem>>, vector<128x128xbf16>
    %c256_i32 = arith.constant 256 : i32
    %22 = vector.broadcast %c256_i32 : i32 to vector<256x1xi32>
    %23 = arith.subi %0, %22 : vector<256x1xi32>
    %24 = vector.broadcast %23 : vector<256x1xi32> to vector<256x128xi32>
    %25 = arith.cmpi eq, %24, %1 : vector<256x128xi32>
    %26 = arith.extui %25 : vector<256x128xi1> to vector<256x128xi32>
    %27 = arith.sitofp %26 : vector<256x128xi32> to vector<256x128xf32>
    %28 = arith.truncf %27 : vector<256x128xf32> to vector<256x128xbf16>
    %cst_8 = arith.constant dense<0.000000e+00> : vector<256x128xf32>
    %29 = tpu.matmul %28, %21, %cst_8 {dimension_numbers = #tpu.dot_dimension_numbers<[1], [0], [0], [1], [0, 0, 1, 1], [], []>} : vector<256x128xbf16>, vector<128x128xbf16>, vector<256x128xf32> -> vector<256x128xf32>
    %30 = arith.addf %20, %29 : vector<256x128xf32>
    %c0_9 = arith.constant 0 : index
    %c0_10 = arith.constant 0 : index
    %31 = vector.load %arg5[%c0_9, %c0_10] : memref<256x128xf32, #tpu.memory_space<vmem>>, vector<256x128xf32>
    tpu.vector_store %arg5[%c0_9, %c0_10], %30 {strides = array<i32>} : memref<256x128xf32, #tpu.memory_space<vmem>>, vector<256x128xf32>,
    return
  }
  func.func @transform_0(%arg0: i32) -> (i32, i32) {
    %c0_i32 = arith.constant 0 : i32
    %c0_i32_0 = arith.constant 0 : i32
    return %arg0, %c0_i32 : i32, i32
  }
  func.func @transform_1(%arg0: i32) -> (i32, i32) {
    %c0_i32 = arith.constant 0 : i32
    %c0_i32_0 = arith.constant 0 : i32
    %c0_i32_1 = arith.constant 0 : i32
    return %c0_i32, %c0_i32_0 : i32, i32
  }
  func.func @transform_2(%arg0: i32) -> (i32, i32) {
    %c0_i32 = arith.constant 0 : i32
    %c0_i32_0 = arith.constant 0 : i32
    %c0_i32_1 = arith.constant 0 : i32
    return %c0_i32, %c0_i32_0 : i32, i32
  }
  func.func @transform_3(%arg0: i32) -> (i32, i32) {
    %c0_i32 = arith.constant 0 : i32
    %c0_i32_0 = arith.constant 0 : i32
    %c0_i32_1 = arith.constant 0 : i32
    return %c0_i32, %c0_i32_0 : i32, i32
  }
  func.func @transform_4(%arg0: i32) -> (i32, i32) {
    %c0_i32 = arith.constant 0 : i32
    %c0_i32_0 = arith.constant 0 : i32
    return %arg0, %c0_i32 : i32, i32
  }
}

</mosaic_0001>

<llo_original>
// kernel: tpu_custom_call.1
$region0: #{tpu_custom_call.1}
  #allocation0 [shape = 'u32[]', space=smem, size = 0x4, offset = 0x4, fixed_abs, tag = 'smem constant byte address 0x4 - core index']
  #allocation1 [shape = 'u32[144,128]{1,0:T(1,128)}', space=vmem, size = 0x12000, scoped, tag = 'internal scratch']
  %s0 = inlined_call_operand.vmem [shape: s32[4096,1], index: 0, kind: input, shape index: {}]
  %s1 = inlined_call_operand.vmem [shape: bf16[128,128], index: 1, kind: input, shape index: {}]
  %s2 = inlined_call_operand.vmem [shape: bf16[128,128], index: 2, kind: input, shape index: {}]
  %s3 = inlined_call_operand.vmem [shape: bf16[128,128], index: 3, kind: input, shape index: {}]
  %s4 = inlined_call_operand.hbm [shape: f32[4096,128], index: 4, kind: output, shape index: {}]
  %s5 = sld [smem:[#allocation0]]
  $region49: #{tpu_custom_call.1} parent=0
    _
  %s7 = ssub.s32 1, %s5
  %s8 = scalar_select 0, %s7, %s5
  $region1: #{tpu_custom_call.1} parent=0
    #allocation2 [shape = 'u8[262144]{0}', space=vmem, size = 0x40000, scoped, tag = 'output window, operand 0']
    #allocation3 [shape = 's32[2]{0}', space=sflag, size = 0x8, scoped, tag = 'scoped memory for tpu_custom_call.1']
    %9 = vsyncpa [#allocation3], 0
    %s10 = scalar_lea.sflag [#allocation3], 1
    %11 = vsyncpa %s10, 0
    loop: start=0, step=1, limit=18
    $region2: #{tpu_custom_call.1} parent=1 // loop_pre_header
      _
    $region3: #{tpu_custom_call.1} parent=1 // loop_header
      %s13 = sphi 0, %s17
      %p14 = scmp.ge.s32.totalorder %s13, 18
      %s23 = sphi 0, %s25
      %s26 = sphi 0, %s23
      %s27 = sphi 0, %s26
      %s43 = sphi 0, %s27
      %s47 = sphi 0, %s47
      %s49 = sphi 0, %s47
      %s50 = sphi 0, %s49
      %s64 = sphi 0, %s50
      %s68 = sphi 0, %s68
      %s70 = sphi 0, %s68
      %s71 = sphi 0, %s70
      %s85 = sphi 0, %s71
      %s89 = sphi 0, %s89
      %s91 = sphi 0, %s89
      %s92 = sphi 0, %s91
      %s106 = sphi 0, %s92
      %s112 = sphi 0, %s114
      %s115 = sphi 0, %s112
      %s116 = sphi 0, %s115
      %s132 = sphi 0, %s116
    $region4: #{tpu_custom_call.1} parent=1 // loop_header_branch
      %16 = sbr.rel (%p14) target = $region8
    $region5: #{tpu_custom_call.1} parent=1 // loop_body
      %s18 = ssub.s32 %s13, 1
      %s19 = ssub.s32 %s13, 2
      %s20 = sadd.s32 %s13, 1
      %s21 = ssub.s32 %s13, %s20
      %p22 = scmp.eq.s32.totalorder %s21, 0
      %s24 = sadd.s32 %s23, 1
      %s25 = scalar_select %p22, %s23, %s24
      %p28 = pneg %p22
      %p29 = scmp.eq.s32.totalorder %s13, 15
      %p30 = por %p28, %p29
      %p31 = scmp.ne.s32.totalorder %s23, %s26
      %p32 = scmp.eq.s32.totalorder %s13, 0
      %p33 = por %p31, %p32
      %p34 = scmp.ne.s32.totalorder %s23, %s26
      %p35 = scmp.eq.s32.totalorder %s18, 15
      %p36 = por %p34, %p35
      %p37 = scmp.ne.s32.totalorder %s26, %s27
      %p38 = scmp.eq.s32.totalorder %s18, 0
      %p39 = por %p37, %p38
      %p40 = scmp.ne.s32.totalorder %s26, %s27
      %p41 = scmp.eq.s32.totalorder %s19, 15
      %p42 = por %p40, %p41
      %p44 = scmp.ne.s32.totalorder %s27, %s43
      %p45 = scmp.eq.s32.totalorder %s19, 0
      %p46 = por %p44, %p45
      %s48 = sadd.s32 %s47, 1
      %p51 = scmp.eq.s32.totalorder %s13, 15
      %p52 = scmp.ne.s32.totalorder %s47, %s49
      %p53 = scmp.eq.s32.totalorder %s13, 0
      %p54 = por %p52, %p53
      %p55 = scmp.ne.s32.totalorder %s47, %s49
      %p56 = scmp.eq.s32.totalorder %s18, 15
      %p57 = por %p55, %p56
      %p58 = scmp.ne.s32.totalorder %s49, %s50
      %p59 = scmp.eq.s32.totalorder %s18, 0
      %p60 = por %p58, %p59
      %p61 = scmp.ne.s32.totalorder %s49, %s50
      %p62 = scmp.eq.s32.totalorder %s19, 15
      %p63 = por %p61, %p62
      %p65 = scmp.ne.s32.totalorder %s50, %s64
      %p66 = scmp.eq.s32.totalorder %s19, 0
      %p67 = por %p65, %p66
      %s69 = sadd.s32 %s68, 1
      %p72 = scmp.eq.s32.totalorder %s13, 15
      %p73 = scmp.ne.s32.totalorder %s68, %s70
      %p74 = scmp.eq.s32.totalorder %s13, 0
      %p75 = por %p73, %p74
      %p76 = scmp.ne.s32.totalorder %s68, %s70
      %p77 = scmp.eq.s32.totalorder %s18, 15
      %p78 = por %p76, %p77
      %p79 = scmp.ne.s32.totalorder %s70, %s71
      %p80 = scmp.eq.s32.totalorder %s18, 0
      %p81 = por %p79, %p80
      %p82 = scmp.ne.s32.totalorder %s70, %s71
      %p83 = scmp.eq.s32.totalorder %s19, 15
      %p84 = por %p82, %p83
      %p86 = scmp.ne.s32.totalorder %s71, %s85
      %p87 = scmp.eq.s32.totalorder %s19, 0
      %p88 = por %p86, %p87
      %s90 = sadd.s32 %s89, 1
      %p93 = scmp.eq.s32.totalorder %s13, 15
      %p94 = scmp.ne.s32.totalorder %s89, %s91
      %p95 = scmp.eq.s32.totalorder %s13, 0
      %p96 = por %p94, %p95
      %p97 = scmp.ne.s32.totalorder %s89, %s91
      %p98 = scmp.eq.s32.totalorder %s18, 15
      %p99 = por %p97, %p98
      %p100 = scmp.ne.s32.totalorder %s91, %s92
      %p101 = scmp.eq.s32.totalorder %s18, 0
      %p102 = por %p100, %p101
      %p103 = scmp.ne.s32.totalorder %s91, %s92
      %p104 = scmp.eq.s32.totalorder %s19, 15
      %p105 = por %p103, %p104
      %p107 = scmp.ne.s32.totalorder %s92, %s106
      %p108 = scmp.eq.s32.totalorder %s19, 0
      %p109 = por %p107, %p108
      %s110 = ssub.s32 %s13, %s20
      %p111 = scmp.eq.s32.totalorder %s110, 0
      %s113 = sadd.s32 %s112, 1
      %s114 = scalar_select %p111, %s112, %s113
      %p117 = pneg %p111
      %p118 = scmp.eq.s32.totalorder %s13, 15
      %p119 = por %p117, %p118
      %p120 = scmp.ne.s32.totalorder %s112, %s115
      %p121 = scmp.eq.s32.totalorder %s13, 0
      %p122 = por %p120, %p121
      %p123 = scmp.ne.s32.totalorder %s112, %s115
      %p124 = scmp.eq.s32.totalorder %s18, 15
      %p125 = por %p123, %p124
      %p126 = scmp.ne.s32.totalorder %s115, %s116
      %p127 = scmp.eq.s32.totalorder %s18, 0
      %p128 = por %p126, %p127
      %p129 = scmp.ne.s32.totalorder %s115, %s116
      %p130 = scmp.eq.s32.totalorder %s19, 15
      %p131 = por %p129, %p130
      %p133 = scmp.ne.s32.totalorder %s116, %s132
      %p134 = scmp.eq.s32.totalorder %s19, 0
      %p135 = por %p133, %p134
      %p136 = scmp.le.s32.totalorder 1, %s13
      %p137 = scmp.lt.s32.totalorder %s13, 17
      %p138 = pnand %p136, %p137
      %p139 = pneg %p138
      // Predicated region
      $region9: #{tpu_custom_call.1} parent=5 // pred_check
        _
      $region10: #{tpu_custom_call.1} parent=5 // pred_check_branch
        %141 = sbr.rel (%p138) target = $region12
      $region11: #{tpu_custom_call.1} parent=5 // pred_region
        %s142 = ssub.s32 %s13, 1
        // Predicated region
        $region13: #{tpu_custom_call.1} parent=11 // pred_check
          %p143 = pneg %p60
        $region14: #{tpu_custom_call.1} parent=11 // pred_check_branch
          %145 = sbr.rel (%p143) target = $region16
        $region15: #{tpu_custom_call.1} parent=11 // pred_region
          _
        $region16: #{tpu_custom_call.1} parent=11 // pred_fallthru
          _
        // Predicated region
        $region17: #{tpu_custom_call.1} parent=11 // pred_check
          %p146 = pneg %p81
        $region18: #{tpu_custom_call.1} parent=11 // pred_check_branch
          %148 = sbr.rel (%p146) target = $region20
        $region19: #{tpu_custom_call.1} parent=11 // pred_region
          _
        $region20: #{tpu_custom_call.1} parent=11 // pred_fallthru
          _
        // Predicated region
        $region21: #{tpu_custom_call.1} parent=11 // pred_check
          %p149 = pneg %p102
        $region22: #{tpu_custom_call.1} parent=11 // pred_check_branch
          %151 = sbr.rel (%p149) target = $region24
        $region23: #{tpu_custom_call.1} parent=11 // pred_region
          _
        $region24: #{tpu_custom_call.1} parent=11 // pred_fallthru
          _
      $region12: #{tpu_custom_call.1} parent=5 // pred_fallthru
        _
      %p152 = scmp.lt.s32.totalorder %s13, 16
      // Predicated region
      $region25: #{tpu_custom_call.1} parent=5 // pred_check
        %p153 = pneg %p152
      $region26: #{tpu_custom_call.1} parent=5 // pred_check_branch
        %155 = sbr.rel (%p153) target = $region28
      $region27: #{tpu_custom_call.1} parent=5 // pred_region
        // Predicated region
        $region29: #{tpu_custom_call.1} parent=27 // pred_check
          %p156 = pneg %p33
        $region30: #{tpu_custom_call.1} parent=27 // pred_check_branch
          %158 = sbr.rel (%p156) target = $region32
        $region31: #{tpu_custom_call.1} parent=27 // pred_region
          %s159 = smul.u32 32, %s13
          %p160 = scmp.lt.s32.totalorder %s159, 511
          %s161 = scalar_select %p160, %s159, 511
          %s162 = smul.addr %s161, 8
          %s163 = scalar_lea.vmem %s0, %s162
          %s164 = smul.u32 32, %s13
        $region32: #{tpu_custom_call.1} parent=27 // pred_fallthru
          _
      $region28: #{tpu_custom_call.1} parent=5 // pred_fallthru
        _
      %p165 = scmp.le.s32.totalorder 1, %s13
      %p166 = scmp.lt.s32.totalorder %s13, 17
      %p167 = pnand %p165, %p166
      %p168 = pneg %p167
      // Predicated region
      $region33: #{tpu_custom_call.1} parent=5 // pred_check
        _
      $region34: #{tpu_custom_call.1} parent=5 // pred_check_branch
        %170 = sbr.rel (%p167) target = $region36
      $region35: #{tpu_custom_call.1} parent=5 // pred_region
        %s171 = ssub.s32 %s13, 1
        %s172 = smul.u32 32, %s18
        %p173 = scmp.lt.s32.totalorder %s172, 511
        %s174 = scalar_select %p173, %s172, 511
        %s175 = smul.addr %s174, 8
        %s176 = scalar_lea.vmem %s0, %s175
        %p177 = pneg %p39
        %p178 = pneg %p36
        %p179 = pneg %p60
        %p180 = pneg %p57
        %p181 = pneg %p81
        %p182 = pneg %p78
        %p183 = pneg %p102
        %p184 = pneg %p99
        %p185 = pneg %p128
        %p186 = pneg %p125
        %s187 = sand.u32 %s115, 1
        %s188 = scalar_lea.sflag [#allocation3], %s187
        %s189 = sand.u32 %s115, 1
        %s190 = smul.addr %s189, 256
        %s191 = scalar_lea.vmem [#allocation2], %s190
        %s192 = smul.u32 32, %s18
        %p193 = scmp.lt.s32.totalorder %s192, 511
        %s194 = scalar_select %p193, %s192, 511
        %s195 = smul.addr %s194, 8
        %s196 = scalar_lea.vmem %s0, %s195
        %s197 = smul.u32 32, %s18
        %s198 = smul.u32 32, %s18
        %v200 = vld [vmem:[%s196] sm:$0xff]
        %v201 = vld [vmem:[%s196 + $0x8] sm:$0xff]
        %v202 = vld [vmem:[%s196 + $0x10] sm:$0xff]
        %v203 = vld [vmem:[%s196 + $0x18] sm:$0xff]
        %v204 = vld [vmem:[%s196 + $0x20] sm:$0xff]
        %v205 = vld [vmem:[%s196 + $0x28] sm:$0xff]
        %v206 = vld [vmem:[%s196 + $0x30] sm:$0xff]
        %v207 = vld [vmem:[%s196 + $0x38] sm:$0xff]
        %v208 = vld [vmem:[%s196 + $0x40] sm:$0xff]
        %v209 = vld [vmem:[%s196 + $0x48] sm:$0xff]
        %v210 = vld [vmem:[%s196 + $0x50] sm:$0xff]
        %v211 = vld [vmem:[%s196 + $0x58] sm:$0xff]
        %v212 = vld [vmem:[%s196 + $0x60] sm:$0xff]
        %v213 = vld [vmem:[%s196 + $0x68] sm:$0xff]
        %v214 = vld [vmem:[%s196 + $0x70] sm:$0xff]
        %v215 = vld [vmem:[%s196 + $0x78] sm:$0xff]
        %v216 = vld [vmem:[%s196 + $0x80] sm:$0xff]
        %v217 = vld [vmem:[%s196 + $0x88] sm:$0xff]
        %v218 = vld [vmem:[%s196 + $0x90] sm:$0xff]
        %v219 = vld [vmem:[%s196 + $0x98] sm:$0xff]
        %v220 = vld [vmem:[%s196 + $0xa0] sm:$0xff]
        %v221 = vld [vmem:[%s196 + $0xa8] sm:$0xff]
        %v222 = vld [vmem:[%s196 + $0xb0] sm:$0xff]
        %v223 = vld [vmem:[%s196 + $0xb8] sm:$0xff]
        %v224 = vld [vmem:[%s196 + $0xc0] sm:$0xff]
        %v225 = vld [vmem:[%s196 + $0xc8] sm:$0xff]
        %v226 = vld [vmem:[%s196 + $0xd0] sm:$0xff]
        %v227 = vld [vmem:[%s196 + $0xd8] sm:$0xff]
        %v228 = vld [vmem:[%s196 + $0xe0] sm:$0xff]
        %v229 = vld [vmem:[%s196 + $0xe8] sm:$0xff]
        %v230 = vld [vmem:[%s196 + $0xf0] sm:$0xff]
        %v231 = vld [vmem:[%s196 + $0xf8] sm:$0xff]
        %v232 = vlaneseq
        %v233 = vand.u32 %v232, 127
        %v234 = vld [vmem:[%s1] sm:$0xf]
        %v235 = vld [vmem:[%s1 + $0x4] sm:$0xf]
        %v236 = vld [vmem:[%s1 + $0x8] sm:$0xf]
        %v237 = vld [vmem:[%s1 + $0xc] sm:$0xf]
        %v238 = vld [vmem:[%s1 + $0x10] sm:$0xf]
        %v239 = vld [vmem:[%s1 + $0x14] sm:$0xf]
        %v240 = vld [vmem:[%s1 + $0x18] sm:$0xf]
        %v241 = vld [vmem:[%s1 + $0x1c] sm:$0xf]
        %v242 = vld [vmem:[%s1 + $0x20] sm:$0xf]
        %v243 = vld [vmem:[%s1 + $0x24] sm:$0xf]
        %v244 = vld [vmem:[%s1 + $0x28] sm:$0xf]
        %v245 = vld [vmem:[%s1 + $0x2c] sm:$0xf]
        %v246 = vld [vmem:[%s1 + $0x30] sm:$0xf]
        %v247 = vld [vmem:[%s1 + $0x34] sm:$0xf]
        %v248 = vld [vmem:[%s1 + $0x38] sm:$0xf]
        %v249 = vld [vmem:[%s1 + $0x3c] sm:$0xf]
        %250 = vset.pattern.permute.xlu0 0
        %251 = vperm.xlu0 %250, %v200
        %v252 = vpop.permute.xlu0 %251
        %253 = vset.pattern.permute.xlu0 0
        %254 = vperm.xlu0 %253, %v201
        %v255 = vpop.permute.xlu0 %254
        %256 = vset.pattern.permute.xlu0 0
        %257 = vperm.xlu0 %256, %v202
        %v258 = vpop.permute.xlu0 %257
        %259 = vset.pattern.permute.xlu0 0
        %260 = vperm.xlu0 %259, %v203
        %v261 = vpop.permute.xlu0 %260
        %262 = vset.pattern.permute.xlu0 0
        %263 = vperm.xlu0 %262, %v204
        %v264 = vpop.permute.xlu0 %263
        %265 = vset.pattern.permute.xlu0 0
        %266 = vperm.xlu0 %265, %v205
        %v267 = vpop.permute.xlu0 %266
        %268 = vset.pattern.permute.xlu0 0
        %269 = vperm.xlu0 %268, %v206
        %v270 = vpop.permute.xlu0 %269
        %271 = vset.pattern.permute.xlu0 0
        %272 = vperm.xlu0 %271, %v207
        %v273 = vpop.permute.xlu0 %272
        %274 = vset.pattern.permute.xlu0 0
        %275 = vperm.xlu0 %274, %v208
        %v276 = vpop.permute.xlu0 %275
        %277 = vset.pattern.permute.xlu0 0
        %278 = vperm.xlu0 %277, %v209
        %v279 = vpop.permute.xlu0 %278
        %280 = vset.pattern.permute.xlu0 0
        %281 = vperm.xlu0 %280, %v210
        %v282 = vpop.permute.xlu0 %281
        %283 = vset.pattern.permute.xlu0 0
        %284 = vperm.xlu0 %283, %v211
        %v285 = vpop.permute.xlu0 %284
        %286 = vset.pattern.permute.xlu0 0
        %287 = vperm.xlu0 %286, %v212
        %v288 = vpop.permute.xlu0 %287
        %289 = vset.pattern.permute.xlu0 0
        %290 = vperm.xlu0 %289, %v213
        %v291 = vpop.permute.xlu0 %290
        %292 = vset.pattern.permute.xlu0 0
        %293 = vperm.xlu0 %292, %v214
        %v294 = vpop.permute.xlu0 %293
        %295 = vset.pattern.permute.xlu0 0
        %296 = vperm.xlu0 %295, %v215
        %v297 = vpop.permute.xlu0 %296
        %298 = vset.pattern.permute.xlu0 0
        %299 = vperm.xlu0 %298, %v216
        %v300 = vpop.permute.xlu0 %299
        %301 = vset.pattern.permute.xlu0 0
        %302 = vperm.xlu0 %301, %v217
        %v303 = vpop.permute.xlu0 %302
        %304 = vset.pattern.permute.xlu0 0
        %305 = vperm.xlu0 %304, %v218
        %v306 = vpop.permute.xlu0 %305
        %307 = vset.pattern.permute.xlu0 0
        %308 = vperm.xlu0 %307, %v219
        %v309 = vpop.permute.xlu0 %308
        %310 = vset.pattern.permute.xlu0 0
        %311 = vperm.xlu0 %310, %v220
        %v312 = vpop.permute.xlu0 %311
        %313 = vset.pattern.permute.xlu0 0
        %314 = vperm.xlu0 %313, %v221
        %v315 = vpop.permute.xlu0 %314
        %316 = vset.pattern.permute.xlu0 0
        %317 = vperm.xlu0 %316, %v222
        %v318 = vpop.permute.xlu0 %317
        %319 = vset.pattern.permute.xlu0 0
        %320 = vperm.xlu0 %319, %v223
        %v321 = vpop.permute.xlu0 %320
        %322 = vset.pattern.permute.xlu0 0
        %323 = vperm.xlu0 %322, %v224
        %v324 = vpop.permute.xlu0 %323
        %325 = vset.pattern.permute.xlu0 0
        %326 = vperm.xlu0 %325, %v225
        %v327 = vpop.permute.xlu0 %326
        %328 = vset.pattern.permute.xlu0 0
        %329 = vperm.xlu0 %328, %v226
        %v330 = vpop.permute.xlu0 %329
        %331 = vset.pattern.permute.xlu0 0
        %332 = vperm.xlu0 %331, %v227
        %v333 = vpop.permute.xlu0 %332
        %334 = vset.pattern.permute.xlu0 0
        %335 = vperm.xlu0 %334, %v228
        %v336 = vpop.permute.xlu0 %335
        %337 = vset.pattern.permute.xlu0 0
        %338 = vperm.xlu0 %337, %v229
        %v339 = vpop.permute.xlu0 %338
        %340 = vset.pattern.permute.xlu0 0
        %341 = vperm.xlu0 %340, %v230
        %v342 = vpop.permute.xlu0 %341
        %343 = vset.pattern.permute.xlu0 0
        %344 = vperm.xlu0 %343, %v231
        %v345 = vpop.permute.xlu0 %344
        %vm346 = vcmp.eq.s32.totalorder %v252, %v233
        %vm347 = vcmp.eq.s32.totalorder %v255, %v233
        %vm348 = vcmp.eq.s32.totalorder %v258, %v233
        %vm349 = vcmp.eq.s32.totalorder %v261, %v233
        %vm350 = vcmp.eq.s32.totalorder %v264, %v233
        %vm351 = vcmp.eq.s32.totalorder %v267, %v233
        %vm352 = vcmp.eq.s32.totalorder %v270, %v233
        %vm353 = vcmp.eq.s32.totalorder %v273, %v233
        %vm354 = vcmp.eq.s32.totalorder %v276, %v233
        %vm355 = vcmp.eq.s32.totalorder %v279, %v233
        %vm356 = vcmp.eq.s32.totalorder %v282, %v233
        %vm357 = vcmp.eq.s32.totalorder %v285, %v233
        %vm358 = vcmp.eq.s32.totalorder %v288, %v233
        %vm359 = vcmp.eq.s32.totalorder %v291, %v233
        %vm360 = vcmp.eq.s32.totalorder %v294, %v233
        %vm361 = vcmp.eq.s32.totalorder %v297, %v233
        %vm362 = vcmp.eq.s32.totalorder %v300, %v233
        %vm363 = vcmp.eq.s32.totalorder %v303, %v233
        %vm364 = vcmp.eq.s32.totalorder %v306, %v233
        %vm365 = vcmp.eq.s32.totalorder %v309, %v233
        %vm366 = vcmp.eq.s32.totalorder %v312, %v233
        %vm367 = vcmp.eq.s32.totalorder %v315, %v233
        %vm368 = vcmp.eq.s32.totalorder %v318, %v233
        %vm369 = vcmp.eq.s32.totalorder %v321, %v233
        %vm370 = vcmp.eq.s32.totalorder %v324, %v233
        %vm371 = vcmp.eq.s32.totalorder %v327, %v233
        %vm372 = vcmp.eq.s32.totalorder %v330, %v233
        %vm373 = vcmp.eq.s32.totalorder %v333, %v233
        %vm374 = vcmp.eq.s32.totalorder %v336, %v233
        %vm375 = vcmp.eq.s32.totalorder %v339, %v233
        %vm376 = vcmp.eq.s32.totalorder %v342, %v233
        %vm377 = vcmp.eq.s32.totalorder %v345, %v233
        %v378 = vsel %vm346, 1, 0
        %v379 = vsel %vm347, 1, 0
        %v380 = vsel %vm348, 1, 0
        %v381 = vsel %vm349, 1, 0
        %v382 = vsel %vm350, 1, 0
        %v383 = vsel %vm351, 1, 0
        %v384 = vsel %vm352, 1, 0
        %v385 = vsel %vm353, 1, 0
        %v386 = vsel %vm354, 1, 0
        %v387 = vsel %vm355, 1, 0
        %v388 = vsel %vm356, 1, 0
        %v389 = vsel %vm357, 1, 0
        %v390 = vsel %vm358, 1, 0
        %v391 = vsel %vm359, 1, 0
        %v392 = vsel %vm360, 1, 0
        %v393 = vsel %vm361, 1, 0
        %v394 = vsel %vm362, 1, 0
        %v395 = vsel %vm363, 1, 0
        %v396 = vsel %vm364, 1, 0
        %v397 = vsel %vm365, 1, 0
        %v398 = vsel %vm366, 1, 0
        %v399 = vsel %vm367, 1, 0
        %v400 = vsel %vm368, 1, 0
        %v401 = vsel %vm369, 1, 0
        %v402 = vsel %vm370, 1, 0
        %v403 = vsel %vm371, 1, 0
        %v404 = vsel %vm372, 1, 0
        %v405 = vsel %vm373, 1, 0
        %v406 = vsel %vm374, 1, 0
        %v407 = vsel %vm375, 1, 0
        %v408 = vsel %vm376, 1, 0
        %v409 = vsel %vm377, 1, 0
        %v410 = vcvt.s32.f32 %v378
        %v411 = vcvt.s32.f32 %v379
        %v412 = vcvt.s32.f32 %v380
        %v413 = vcvt.s32.f32 %v381
        %v414 = vcvt.s32.f32 %v382
        %v415 = vcvt.s32.f32 %v383
        %v416 = vcvt.s32.f32 %v384
        %v417 = vcvt.s32.f32 %v385
        %v418 = vcvt.s32.f32 %v386
        %v419 = vcvt.s32.f32 %v387
        %v420 = vcvt.s32.f32 %v388
        %v421 = vcvt.s32.f32 %v389
        %v422 = vcvt.s32.f32 %v390
        %v423 = vcvt.s32.f32 %v391
        %v424 = vcvt.s32.f32 %v392
        %v425 = vcvt.s32.f32 %v393
        %v426 = vcvt.s32.f32 %v394
        %v427 = vcvt.s32.f32 %v395
        %v428 = vcvt.s32.f32 %v396
        %v429 = vcvt.s32.f32 %v397
        %v430 = vcvt.s32.f32 %v398
        %v431 = vcvt.s32.f32 %v399
        %v432 = vcvt.s32.f32 %v400
        %v433 = vcvt.s32.f32 %v401
        %v434 = vcvt.s32.f32 %v402
        %v435 = vcvt.s32.f32 %v403
        %v436 = vcvt.s32.f32 %v404
        %v437 = vcvt.s32.f32 %v405
        %v438 = vcvt.s32.f32 %v406
        %v439 = vcvt.s32.f32 %v407
        %v440 = vcvt.s32.f32 %v408
        %v441 = vcvt.s32.f32 %v409
        %v442 = vpack.c.bf16 %v411, %v410
        %v443 = vpack.c.bf16 %v413, %v412
        %v444 = vpack.c.bf16 %v415, %v414
        %v445 = vpack.c.bf16 %v417, %v416
        %v446 = vpack.c.bf16 %v419, %v418
        %v447 = vpack.c.bf16 %v421, %v420
        %v448 = vpack.c.bf16 %v423, %v422
        %v449 = vpack.c.bf16 %v425, %v424
        %v450 = vpack.c.bf16 %v427, %v426
        %v451 = vpack.c.bf16 %v429, %v428
        %v452 = vpack.c.bf16 %v431, %v430
        %v453 = vpack.c.bf16 %v433, %v432
        %v454 = vpack.c.bf16 %v435, %v434
        %v455 = vpack.c.bf16 %v437, %v436
        %v456 = vpack.c.bf16 %v439, %v438
        %v457 = vpack.c.bf16 %v441, %v440
        %v458 = vld [vmem:[%s2] sm:$0xf]
        %v459 = vld [vmem:[%s2 + $0x4] sm:$0xf]
        %v460 = vld [vmem:[%s2 + $0x8] sm:$0xf]
        %v461 = vld [vmem:[%s2 + $0xc] sm:$0xf]
        %v462 = vld [vmem:[%s2 + $0x10] sm:$0xf]
        %v463 = vld [vmem:[%s2 + $0x14] sm:$0xf]
        %v464 = vld [vmem:[%s2 + $0x18] sm:$0xf]
        %v465 = vld [vmem:[%s2 + $0x1c] sm:$0xf]
        %v466 = vld [vmem:[%s2 + $0x20] sm:$0xf]
        %v467 = vld [vmem:[%s2 + $0x24] sm:$0xf]
        %v468 = vld [vmem:[%s2 + $0x28] sm:$0xf]
        %v469 = vld [vmem:[%s2 + $0x2c] sm:$0xf]
        %v470 = vld [vmem:[%s2 + $0x30] sm:$0xf]
        %v471 = vld [vmem:[%s2 + $0x34] sm:$0xf]
        %v472 = vld [vmem:[%s2 + $0x38] sm:$0xf]
        %v473 = vld [vmem:[%s2 + $0x3c] sm:$0xf]
        %v474 = vsub.s32 %v200, 128
        %v475 = vsub.s32 %v201, 128
        %v476 = vsub.s32 %v202, 128
        %v477 = vsub.s32 %v203, 128
        %v478 = vsub.s32 %v204, 128
        %v479 = vsub.s32 %v205, 128
        %v480 = vsub.s32 %v206, 128
        %v481 = vsub.s32 %v207, 128
        %v482 = vsub.s32 %v208, 128
        %v483 = vsub.s32 %v209, 128
        %v484 = vsub.s32 %v210, 128
        %v485 = vsub.s32 %v211, 128
        %v486 = vsub.s32 %v212, 128
        %v487 = vsub.s32 %v213, 128
        %v488 = vsub.s32 %v214, 128
        %v489 = vsub.s32 %v215, 128
        %v490 = vsub.s32 %v216, 128
        %v491 = vsub.s32 %v217, 128
        %v492 = vsub.s32 %v218, 128
        %v493 = vsub.s32 %v219, 128
        %v494 = vsub.s32 %v220, 128
        %v495 = vsub.s32 %v221, 128
        %v496 = vsub.s32 %v222, 128
        %v497 = vsub.s32 %v223, 128
        %v498 = vsub.s32 %v224, 128
        %v499 = vsub.s32 %v225, 128
        %v500 = vsub.s32 %v226, 128
        %v501 = vsub.s32 %v227, 128
        %v502 = vsub.s32 %v228, 128
        %v503 = vsub.s32 %v229, 128
        %v504 = vsub.s32 %v230, 128
        %v505 = vsub.s32 %v231, 128
        %506 = vset.pattern.permute.xlu0 0
        %507 = vperm.xlu0 %506, %v474
        %v508 = vpop.permute.xlu0 %507
        %509 = vset.pattern.permute.xlu0 0
        %510 = vperm.xlu0 %509, %v475
        %v511 = vpop.permute.xlu0 %510
        %512 = vset.pattern.permute.xlu0 0
        %513 = vperm.xlu0 %512, %v476
        %v514 = vpop.permute.xlu0 %513
        %515 = vset.pattern.permute.xlu0 0
        %516 = vperm.xlu0 %515, %v477
        %v517 = vpop.permute.xlu0 %516
        %518 = vset.pattern.permute.xlu0 0
        %519 = vperm.xlu0 %518, %v478
        %v520 = vpop.permute.xlu0 %519
        %521 = vset.pattern.permute.xlu0 0
        %522 = vperm.xlu0 %521, %v479
        %v523 = vpop.permute.xlu0 %522
        %524 = vset.pattern.permute.xlu0 0
        %525 = vperm.xlu0 %524, %v480
        %v526 = vpop.permute.xlu0 %525
        %527 = vset.pattern.permute.xlu0 0
        %528 = vperm.xlu0 %527, %v481
        %v529 = vpop.permute.xlu0 %528
        %530 = vset.pattern.permute.xlu0 0
        %531 = vperm.xlu0 %530, %v482
        %v532 = vpop.permute.xlu0 %531
        %533 = vset.pattern.permute.xlu0 0
        %534 = vperm.xlu0 %533, %v483
        %v535 = vpop.permute.xlu0 %534
        %536 = vset.pattern.permute.xlu0 0
        %537 = vperm.xlu0 %536, %v484
        %v538 = vpop.permute.xlu0 %537
        %539 = vset.pattern.permute.xlu0 0
        %540 = vperm.xlu0 %539, %v485
        %v541 = vpop.permute.xlu0 %540
        %542 = vset.pattern.permute.xlu0 0
        %543 = vperm.xlu0 %542, %v486
        %v544 = vpop.permute.xlu0 %543
        %545 = vset.pattern.permute.xlu0 0
        %546 = vperm.xlu0 %545, %v487
        %v547 = vpop.permute.xlu0 %546
        %548 = vset.pattern.permute.xlu0 0
        %549 = vperm.xlu0 %548, %v488
        %v550 = vpop.permute.xlu0 %549
        %551 = vset.pattern.permute.xlu0 0
        %552 = vperm.xlu0 %551, %v489
        %v553 = vpop.permute.xlu0 %552
        %554 = vset.pattern.permute.xlu0 0
        %555 = vperm.xlu0 %554, %v490
        %v556 = vpop.permute.xlu0 %555
        %557 = vset.pattern.permute.xlu0 0
        %558 = vperm.xlu0 %557, %v491
        %v559 = vpop.permute.xlu0 %558
        %560 = vset.pattern.permute.xlu0 0
        %561 = vperm.xlu0 %560, %v492
        %v562 = vpop.permute.xlu0 %561
        %563 = vset.pattern.permute.xlu0 0
        %564 = vperm.xlu0 %563, %v493
        %v565 = vpop.permute.xlu0 %564
        %566 = vset.pattern.permute.xlu0 0
        %567 = vperm.xlu0 %566, %v494
        %v568 = vpop.permute.xlu0 %567
        %569 = vset.pattern.permute.xlu0 0
        %570 = vperm.xlu0 %569, %v495
        %v571 = vpop.permute.xlu0 %570
        %572 = vset.pattern.permute.xlu0 0
        %573 = vperm.xlu0 %572, %v496
        %v574 = vpop.permute.xlu0 %573
        %575 = vset.pattern.permute.xlu0 0
        %576 = vperm.xlu0 %575, %v497
        %v577 = vpop.permute.xlu0 %576
        %578 = vset.pattern.permute.xlu0 0
        %579 = vperm.xlu0 %578, %v498
        %v580 = vpop.permute.xlu0 %579
        %581 = vset.pattern.permute.xlu0 0
        %582 = vperm.xlu0 %581, %v499
        %v583 = vpop.permute.xlu0 %582
        %584 = vset.pattern.permute.xlu0 0
        %585 = vperm.xlu0 %584, %v500
        %v586 = vpop.permute.xlu0 %585
        %587 = vset.pattern.permute.xlu0 0
        %588 = vperm.xlu0 %587, %v501
        %v589 = vpop.permute.xlu0 %588
        %590 = vset.pattern.permute.xlu0 0
        %591 = vperm.xlu0 %590, %v502
        %v592 = vpop.permute.xlu0 %591
        %593 = vset.pattern.permute.xlu0 0
        %594 = vperm.xlu0 %593, %v503
        %v595 = vpop.permute.xlu0 %594
        %596 = vset.pattern.permute.xlu0 0
        %597 = vperm.xlu0 %596, %v504
        %v598 = vpop.permute.xlu0 %597
        %599 = vset.pattern.permute.xlu0 0
        %600 = vperm.xlu0 %599, %v505
        %v601 = vpop.permute.xlu0 %600
        %vm602 = vcmp.eq.s32.totalorder %v508, %v233
        %vm603 = vcmp.eq.s32.totalorder %v511, %v233
        %vm604 = vcmp.eq.s32.totalorder %v514, %v233
        %vm605 = vcmp.eq.s32.totalorder %v517, %v233
        %vm606 = vcmp.eq.s32.totalorder %v520, %v233
        %vm607 = vcmp.eq.s32.totalorder %v523, %v233
        %vm608 = vcmp.eq.s32.totalorder %v526, %v233
        %vm609 = vcmp.eq.s32.totalorder %v529, %v233
        %vm610 = vcmp.eq.s32.totalorder %v532, %v233
        %vm611 = vcmp.eq.s32.totalorder %v535, %v233
        %vm612 = vcmp.eq.s32.totalorder %v538, %v233
        %vm613 = vcmp.eq.s32.totalorder %v541, %v233
        %vm614 = vcmp.eq.s32.totalorder %v544, %v233
        %vm615 = vcmp.eq.s32.totalorder %v547, %v233
        %vm616 = vcmp.eq.s32.totalorder %v550, %v233
        %vm617 = vcmp.eq.s32.totalorder %v553, %v233
        %vm618 = vcmp.eq.s32.totalorder %v556, %v233
        %vm619 = vcmp.eq.s32.totalorder %v559, %v233
        %vm620 = vcmp.eq.s32.totalorder %v562, %v233
        %vm621 = vcmp.eq.s32.totalorder %v565, %v233
        %vm622 = vcmp.eq.s32.totalorder %v568, %v233
        %vm623 = vcmp.eq.s32.totalorder %v571, %v233
        %vm624 = vcmp.eq.s32.totalorder %v574, %v233
        %vm625 = vcmp.eq.s32.totalorder %v577, %v233
        %vm626 = vcmp.eq.s32.totalorder %v580, %v233
        %vm627 = vcmp.eq.s32.totalorder %v583, %v233
        %vm628 = vcmp.eq.s32.totalorder %v586, %v233
        %vm629 = vcmp.eq.s32.totalorder %v589, %v233
        %vm630 = vcmp.eq.s32.totalorder %v592, %v233
        %vm631 = vcmp.eq.s32.totalorder %v595, %v233
        %vm632 = vcmp.eq.s32.totalorder %v598, %v233
        %vm633 = vcmp.eq.s32.totalorder %v601, %v233
        %v634 = vsel %vm602, 1, 0
        %v635 = vsel %vm603, 1, 0
        %v636 = vsel %vm604, 1, 0
        %v637 = vsel %vm605, 1, 0
        %v638 = vsel %vm606, 1, 0
        %v639 = vsel %vm607, 1, 0
        %v640 = vsel %vm608, 1, 0
        %v641 = vsel %vm609, 1, 0
        %v642 = vsel %vm610, 1, 0
        %v643 = vsel %vm611, 1, 0
        %v644 = vsel %vm612, 1, 0
        %v645 = vsel %vm613, 1, 0
        %v646 = vsel %vm614, 1, 0
        %v647 = vsel %vm615, 1, 0
        %v648 = vsel %vm616, 1, 0
        %v649 = vsel %vm617, 1, 0
        %v650 = vsel %vm618, 1, 0
        %v651 = vsel %vm619, 1, 0
        %v652 = vsel %vm620, 1, 0
        %v653 = vsel %vm621, 1, 0
        %v654 = vsel %vm622, 1, 0
        %v655 = vsel %vm623, 1, 0
        %v656 = vsel %vm624, 1, 0
        %v657 = vsel %vm625, 1, 0
        %v658 = vsel %vm626, 1, 0
        %v659 = vsel %vm627, 1, 0
        %v660 = vsel %vm628, 1, 0
        %v661 = vsel %vm629, 1, 0
        %v662 = vsel %vm630, 1, 0
        %v663 = vsel %vm631, 1, 0
        %v664 = vsel %vm632, 1, 0
        %v665 = vsel %vm633, 1, 0
        %v666 = vcvt.s32.f32 %v634
        %v667 = vcvt.s32.f32 %v635
        %v668 = vcvt.s32.f32 %v636
        %v669 = vcvt.s32.f32 %v637
        %v670 = vcvt.s32.f32 %v638
        %v671 = vcvt.s32.f32 %v639
        %v672 = vcvt.s32.f32 %v640
        %v673 = vcvt.s32.f32 %v641
        %v674 = vcvt.s32.f32 %v642
        %v675 = vcvt.s32.f32 %v643
        %v676 = vcvt.s32.f32 %v644
        %v677 = vcvt.s32.f32 %v645
        %v678 = vcvt.s32.f32 %v646
        %v679 = vcvt.s32.f32 %v647
        %v680 = vcvt.s32.f32 %v648
        %v681 = vcvt.s32.f32 %v649
        %v682 = vcvt.s32.f32 %v650
        %v683 = vcvt.s32.f32 %v651
        %v684 = vcvt.s32.f32 %v652
        %v685 = vcvt.s32.f32 %v653
        %v686 = vcvt.s32.f32 %v654
        %v687 = vcvt.s32.f32 %v655
        %v688 = vcvt.s32.f32 %v656
        %v689 = vcvt.s32.f32 %v657
        %v690 = vcvt.s32.f32 %v658
        %v691 = vcvt.s32.f32 %v659
        %v692 = vcvt.s32.f32 %v660
        %v693 = vcvt.s32.f32 %v661
        %v694 = vcvt.s32.f32 %v662
        %v695 = vcvt.s32.f32 %v663
        %v696 = vcvt.s32.f32 %v664
        %v697 = vcvt.s32.f32 %v665
        %v698 = vpack.c.bf16 %v667, %v666
        %v699 = vpack.c.bf16 %v669, %v668
        %v700 = vpack.c.bf16 %v671, %v670
        %v701 = vpack.c.bf16 %v673, %v672
        %v702 = vpack.c.bf16 %v675, %v674
        %v703 = vpack.c.bf16 %v677, %v676
        %v704 = vpack.c.bf16 %v679, %v678
        %v705 = vpack.c.bf16 %v681, %v680
        %v706 = vpack.c.bf16 %v683, %v682
        %v707 = vpack.c.bf16 %v685, %v684
        %v708 = vpack.c.bf16 %v687, %v686
        %v709 = vpack.c.bf16 %v689, %v688
        %v710 = vpack.c.bf16 %v691, %v690
        %v711 = vpack.c.bf16 %v693, %v692
        %v712 = vpack.c.bf16 %v695, %v694
        %v713 = vpack.c.bf16 %v697, %v696
        %v730 = vunpack.c.l.b16 %v458
        %v731 = vunpack.c.l.b16 %v459
        %v732 = vunpack.c.l.b16 %v460
        %v733 = vunpack.c.l.b16 %v461
        %v734 = vunpack.c.l.b16 %v462
        %v735 = vunpack.c.l.b16 %v463
        %v736 = vunpack.c.l.b16 %v464
        %v737 = vunpack.c.l.b16 %v465
        %v738 = vunpack.c.l.b16 %v466
        %v739 = vunpack.c.l.b16 %v467
        %v740 = vunpack.c.l.b16 %v468
        %v741 = vunpack.c.l.b16 %v469
        %v742 = vunpack.c.l.b16 %v470
        %v743 = vunpack.c.l.b16 %v471
        %v744 = vunpack.c.l.b16 %v472
        %v745 = vunpack.c.l.b16 %v473
        %v746 = vpack.c.b16 %v731, %v730
        %v747 = vpack.c.b16 %v733, %v732
        %v748 = vpack.c.b16 %v735, %v734
        %v749 = vpack.c.b16 %v737, %v736
        %v750 = vpack.c.b16 %v739, %v738
        %v751 = vpack.c.b16 %v741, %v740
        %v752 = vpack.c.b16 %v743, %v742
        %v753 = vpack.c.b16 %v745, %v744
        %762 = vmatprep.subr.bf16.mxu0 0
        %763 = vmatpush1.bf16.msra.mxu0 %v746
        %764 = vmatprep.subr.bf16.mxu0 0
        %765 = vmatpush1.bf16.msra.mxu0 %v747
        %766 = vmatprep.subr.bf16.mxu0 0
        %767 = vmatpush1.bf16.msra.mxu0 %v748
        %768 = vmatprep.subr.bf16.mxu0 0
        %769 = vmatpush1.bf16.msra.mxu0 %v749
        %770 = vmatprep.subr.bf16.mxu0 0
        %771 = vmatpush1.bf16.msra.mxu0 %v750
        %772 = vmatprep.subr.bf16.mxu0 0
        %773 = vmatpush1.bf16.msra.mxu0 %v751
        %774 = vmatprep.subr.bf16.mxu0 0
        %775 = vmatpush1.bf16.msra.mxu0 %v752
        %776 = vmatprep.subr.bf16.mxu0 0
        %777 = vmatpush1.bf16.msra.mxu0 %v753
        %778 = vmatprep.subr.bf16.mxu0 0
        %779 = vmatpush1.bf16.msra.mxu0 0
        %780 = vmatprep.subr.bf16.mxu0 0
        %781 = vmatpush1.bf16.msra.mxu0 0
        %782 = vmatprep.subr.bf16.mxu0 0
        %783 = vmatpush1.bf16.msra.mxu0 0
        %784 = vmatprep.subr.bf16.mxu0 0
        %785 = vmatpush1.bf16.msra.mxu0 0
        %786 = vmatprep.subr.bf16.mxu0 0
        %787 = vmatpush1.bf16.msra.mxu0 0
        %788 = vmatprep.subr.bf16.mxu0 0
        %789 = vmatpush1.bf16.msra.mxu0 0
        %790 = vmatprep.subr.bf16.mxu0 0
        %791 = vmatpush1.bf16.msra.mxu0 0
        %792 = vmatprep.subr.bf16.mxu0 0
        %793 = vmatpush1.bf16.msra.mxu0 0
        %794 = vmatprep.mubr.bf16.mxu0 0
        %795 = vmatmul.mubr.bf16.gmra.mrb[0].mxu0 %v698
        %v796 = vpop.f32.mrb[0].mxu0
        %v797 = vadd.f32 0.0, %v796
        %v798 = vpop.f32.mrb[0].mxu0
        %v799 = vpop.f32.mrb[0].mxu0
        %v800 = vadd.f32 0.0, %v799
        %v801 = vpop.f32.mrb[0].mxu0
        %802 = vmatprep.mubr.bf16.mxu0 0
        %803 = vmatmul.mubr.bf16.gmra.mrb[0].mxu0 %v699
        %v804 = vpop.f32.mrb[0].mxu0
        %v805 = vadd.f32 0.0, %v804
        %v806 = vpop.f32.mrb[0].mxu0
        %v807 = vpop.f32.mrb[0].mxu0
        %v808 = vadd.f32 0.0, %v807
        %v809 = vpop.f32.mrb[0].mxu0
        %810 = vmatprep.mubr.bf16.mxu0 0
        %811 = vmatmul.mubr.bf16.gmra.mrb[0].mxu0 %v700
        %v812 = vpop.f32.mrb[0].mxu0
        %v813 = vadd.f32 0.0, %v812
        %v814 = vpop.f32.mrb[0].mxu0
        %v815 = vpop.f32.mrb[0].mxu0
        %v816 = vadd.f32 0.0, %v815
        %v817 = vpop.f32.mrb[0].mxu0
        %818 = vmatprep.mubr.bf16.mxu0 0
        %819 = vmatmul.mubr.bf16.gmra.mrb[0].mxu0 %v701
        %v820 = vpop.f32.mrb[0].mxu0
        %v821 = vadd.f32 0.0, %v820
        %v822 = vpop.f32.mrb[0].mxu0
        %v823 = vpop.f32.mrb[0].mxu0
        %v824 = vadd.f32 0.0, %v823
        %v825 = vpop.f32.mrb[0].mxu0
        %826 = vmatprep.mubr.bf16.mxu0 0
        %827 = vmatmul.mubr.bf16.gmra.mrb[0].mxu0 %v702
        %v828 = vpop.f32.mrb[0].mxu0
        %v829 = vadd.f32 0.0, %v828
        %v830 = vpop.f32.mrb[0].mxu0
        %v831 = vpop.f32.mrb[0].mxu0
        %v832 = vadd.f32 0.0, %v831
        %v833 = vpop.f32.mrb[0].mxu0
        %834 = vmatprep.mubr.bf16.mxu0 0
        %835 = vmatmul.mubr.bf16.gmra.mrb[0].mxu0 %v703
        %v836 = vpop.f32.mrb[0].mxu0
        %v837 = vadd.f32 0.0, %v836
        %v838 = vpop.f32.mrb[0].mxu0
        %v839 = vpop.f32.mrb[0].mxu0
        %v840 = vadd.f32 0.0, %v839
        %v841 = vpop.f32.mrb[0].mxu0
        %842 = vmatprep.mubr.bf16.mxu0 0
        %843 = vmatmul.mubr.bf16.gmra.mrb[0].mxu0 %v704
        %v844 = vpop.f32.mrb[0].mxu0
        %v845 = vadd.f32 0.0, %v844
        %v846 = vpop.f32.mrb[0].mxu0
        %v847 = vpop.f32.mrb[0].mxu0
        %v848 = vadd.f32 0.0, %v847
        %v849 = vpop.f32.mrb[0].mxu0
        %850 = vmatprep.mubr.bf16.mxu0 0
        %851 = vmatmul.mubr.bf16.gmra.mrb[0].mxu0 %v705
        %v852 = vpop.f32.mrb[0].mxu0
        %v853 = vadd.f32 0.0, %v852
        %v854 = vpop.f32.mrb[0].mxu0
        %v855 = vpop.f32.mrb[0].mxu0
        %v856 = vadd.f32 0.0, %v855
        %v857 = vpop.f32.mrb[0].mxu0
        %858 = vmatprep.mubr.bf16.mxu0 0
        %859 = vmatmul.mubr.bf16.gmra.mrb[0].mxu0 %v706
        %v860 = vpop.f32.mrb[0].mxu0
        %v861 = vadd.f32 0.0, %v860
        %v862 = vpop.f32.mrb[0].mxu0
        %v863 = vpop.f32.mrb[0].mxu0
        %v864 = vadd.f32 0.0, %v863
        %v865 = vpop.f32.mrb[0].mxu0
        %866 = vmatprep.mubr.bf16.mxu0 0
        %867 = vmatmul.mubr.bf16.gmra.mrb[0].mxu0 %v707
        %v868 = vpop.f32.mrb[0].mxu0
        %v869 = vadd.f32 0.0, %v868
        %v870 = vpop.f32.mrb[0].mxu0
        %v871 = vpop.f32.mrb[0].mxu0
        %v872 = vadd.f32 0.0, %v871
        %v873 = vpop.f32.mrb[0].mxu0
        %874 = vmatprep.mubr.bf16.mxu0 0
        %875 = vmatmul.mubr.bf16.gmra.mrb[0].mxu0 %v708
        %v876 = vpop.f32.mrb[0].mxu0
        %v877 = vadd.f32 0.0, %v876
        %v878 = vpop.f32.mrb[0].mxu0
        %v879 = vpop.f32.mrb[0].mxu0
        %v880 = vadd.f32 0.0, %v879
        %v881 = vpop.f32.mrb[0].mxu0
        %882 = vmatprep.mubr.bf16.mxu0 0
        %883 = vmatmul.mubr.bf16.gmra.mrb[0].mxu0 %v709
        %v884 = vpop.f32.mrb[0].mxu0
        %v885 = vadd.f32 0.0, %v884
        %v886 = vpop.f32.mrb[0].mxu0
        %v887 = vpop.f32.mrb[0].mxu0
        %v888 = vadd.f32 0.0, %v887
        %v889 = vpop.f32.mrb[0].mxu0
        %890 = vmatprep.mubr.bf16.mxu0 0
        %891 = vmatmul.mubr.bf16.gmra.mrb[0].mxu0 %v710
        %v892 = vpop.f32.mrb[0].mxu0
        %v893 = vadd.f32 0.0, %v892
        %v894 = vpop.f32.mrb[0].mxu0
        %v895 = vpop.f32.mrb[0].mxu0
        %v896 = vadd.f32 0.0, %v895
        %v897 = vpop.f32.mrb[0].mxu0
        %898 = vmatprep.mubr.bf16.mxu0 0
        %899 = vmatmul.mubr.bf16.gmra.mrb[0].mxu0 %v711
        %v900 = vpop.f32.mrb[0].mxu0
        %v901 = vadd.f32 0.0, %v900
        %v902 = vpop.f32.mrb[0].mxu0
        %v903 = vpop.f32.mrb[0].mxu0
        %v904 = vadd.f32 0.0, %v903
        %v905 = vpop.f32.mrb[0].mxu0
        %906 = vmatprep.mubr.bf16.mxu0 0
        %907 = vmatmul.mubr.bf16.gmra.mrb[0].mxu0 %v712
        %v908 = vpop.f32.mrb[0].mxu0
        %v909 = vadd.f32 0.0, %v908
        %v910 = vpop.f32.mrb[0].mxu0
        %v911 = vpop.f32.mrb[0].mxu0
        %v912 = vadd.f32 0.0, %v911
        %v913 = vpop.f32.mrb[0].mxu0
        %914 = vmatprep.mubr.bf16.mxu0 0
        %915 = vmatmul.mubr.bf16.gmra.mrb[0].mxu0 %v713
        %v916 = vpop.f32.mrb[0].mxu0
        %v917 = vadd.f32 0.0, %v916
        %v918 = vpop.f32.mrb[0].mxu0
        %v919 = vpop.f32.mrb[0].mxu0
        %v920 = vadd.f32 0.0, %v919
        %v921 = vpop.f32.mrb[0].mxu0
        %922 = vdwg.mxu0
        %v939 = vunpack.c.l.b16 %v234
        %v940 = vunpack.c.l.b16 %v235
        %v941 = vunpack.c.l.b16 %v236
        %v942 = vunpack.c.l.b16 %v237
        %v943 = vunpack.c.l.b16 %v238
        %v944 = vunpack.c.l.b16 %v239
        %v945 = vunpack.c.l.b16 %v240
        %v946 = vunpack.c.l.b16 %v241
        %v947 = vunpack.c.l.b16 %v242
        %v948 = vunpack.c.l.b16 %v243
        %v949 = vunpack.c.l.b16 %v244
        %v950 = vunpack.c.l.b16 %v245
        %v951 = vunpack.c.l.b16 %v246
        %v952 = vunpack.c.l.b16 %v247
        %v953 = vunpack.c.l.b16 %v248
        %v954 = vunpack.c.l.b16 %v249
        %v955 = vpack.c.b16 %v940, %v939
        %v956 = vpack.c.b16 %v942, %v941
        %v957 = vpack.c.b16 %v944, %v943
        %v958 = vpack.c.b16 %v946, %v945
        %v959 = vpack.c.b16 %v948, %v947
        %v960 = vpack.c.b16 %v950, %v949
        %v961 = vpack.c.b16 %v952, %v951
        %v962 = vpack.c.b16 %v954, %v953
        %971 = vmatprep.subr.bf16.mxu0 0
        %972 = vmatpush1.bf16.msra.mxu0 %v955
        %973 = vmatprep.subr.bf16.mxu0 0
        %974 = vmatpush1.bf16.msra.mxu0 %v956
        %975 = vmatprep.subr.bf16.mxu0 0
        %976 = vmatpush1.bf16.msra.mxu0 %v957
        %977 = vmatprep.subr.bf16.mxu0 0
        %978 = vmatpush1.bf16.msra.mxu0 %v958
        %979 = vmatprep.subr.bf16.mxu0 0
        %980 = vmatpush1.bf16.msra.mxu0 %v959
        %981 = vmatprep.subr.bf16.mxu0 0
        %982 = vmatpush1.bf16.msra.mxu0 %v960
        %983 = vmatprep.subr.bf16.mxu0 0
        %984 = vmatpush1.bf16.msra.mxu0 %v961
        %985 = vmatprep.subr.bf16.mxu0 0
        %986 = vmatpush1.bf16.msra.mxu0 %v962
        %987 = vmatprep.subr.bf16.mxu0 0
        %988 = vmatpush1.bf16.msra.mxu0 0
        %989 = vmatprep.subr.bf16.mxu0 0
        %990 = vmatpush1.bf16.msra.mxu0 0
        %991 = vmatprep.subr.bf16.mxu0 0
        %992 = vmatpush1.bf16.msra.mxu0 0
        %993 = vmatprep.subr.bf16.mxu0 0
        %994 = vmatpush1.bf16.msra.mxu0 0
        %995 = vmatprep.subr.bf16.mxu0 0
        %996 = vmatpush1.bf16.msra.mxu0 0
        %997 = vmatprep.subr.bf16.mxu0 0
        %998 = vmatpush1.bf16.msra.mxu0 0
        %999 = vmatprep.subr.bf16.mxu0 0
        %1000 = vmatpush1.bf16.msra.mxu0 0
        %1001 = vmatprep.subr.bf16.mxu0 0
        %1002 = vmatpush1.bf16.msra.mxu0 0
        %1003 = vmatprep.mubr.bf16.mxu0 0
        %1004 = vmatmul.mubr.bf16.gmra.mrb[0].mxu0 %v442
        %v1005 = vpop.f32.mrb[0].mxu0
        %v1006 = vadd.f32 %v797, %v1005
        %v1007 = vpop.f32.mrb[0].mxu0
        %v1008 = vpop.f32.mrb[0].mxu0
        %v1009 = vadd.f32 %v800, %v1008
        %v1010 = vpop.f32.mrb[0].mxu0
        %1011 = vmatprep.mubr.bf16.mxu0 0
        %1012 = vmatmul.mubr.bf16.gmra.mrb[0].mxu0 %v443
        %v1013 = vpop.f32.mrb[0].mxu0
        %v1014 = vadd.f32 %v805, %v1013
        %v1015 = vpop.f32.mrb[0].mxu0
        %v1016 = vpop.f32.mrb[0].mxu0
        %v1017 = vadd.f32 %v808, %v1016
        %v1018 = vpop.f32.mrb[0].mxu0
        %1019 = vmatprep.mubr.bf16.mxu0 0
        %1020 = vmatmul.mubr.bf16.gmra.mrb[0].mxu0 %v444
        %v1021 = vpop.f32.mrb[0].mxu0
        %v1022 = vadd.f32 %v813, %v1021
        %v1023 = vpop.f32.mrb[0].mxu0
        %v1024 = vpop.f32.mrb[0].mxu0
        %v1025 = vadd.f32 %v816, %v1024
        %v1026 = vpop.f32.mrb[0].mxu0
        %1027 = vmatprep.mubr.bf16.mxu0 0
        %1028 = vmatmul.mubr.bf16.gmra.mrb[0].mxu0 %v445
        %v1029 = vpop.f32.mrb[0].mxu0
        %v1030 = vadd.f32 %v821, %v1029
        %v1031 = vpop.f32.mrb[0].mxu0
        %v1032 = vpop.f32.mrb[0].mxu0
        %v1033 = vadd.f32 %v824, %v1032
        %v1034 = vpop.f32.mrb[0].mxu0
        %1035 = vmatprep.mubr.bf16.mxu0 0
        %1036 = vmatmul.mubr.bf16.gmra.mrb[0].mxu0 %v446
        %v1037 = vpop.f32.mrb[0].mxu0
        %v1038 = vadd.f32 %v829, %v1037
        %v1039 = vpop.f32.mrb[0].mxu0
        %v1040 = vpop.f32.mrb[0].mxu0
        %v1041 = vadd.f32 %v832, %v1040
        %v1042 = vpop.f32.mrb[0].mxu0
        %1043 = vmatprep.mubr.bf16.mxu0 0
        %1044 = vmatmul.mubr.bf16.gmra.mrb[0].mxu0 %v447
        %v1045 = vpop.f32.mrb[0].mxu0
        %v1046 = vadd.f32 %v837, %v1045
        %v1047 = vpop.f32.mrb[0].mxu0
        %v1048 = vpop.f32.mrb[0].mxu0
        %v1049 = vadd.f32 %v840, %v1048
        %v1050 = vpop.f32.mrb[0].mxu0
        %1051 = vmatprep.mubr.bf16.mxu0 0
        %1052 = vmatmul.mubr.bf16.gmra.mrb[0].mxu0 %v448
        %v1053 = vpop.f32.mrb[0].mxu0
        %v1054 = vadd.f32 %v845, %v1053
        %v1055 = vpop.f32.mrb[0].mxu0
        %v1056 = vpop.f32.mrb[0].mxu0
        %v1057 = vadd.f32 %v848, %v1056
        %v1058 = vpop.f32.mrb[0].mxu0
        %1059 = vmatprep.mubr.bf16.mxu0 0
        %1060 = vmatmul.mubr.bf16.gmra.mrb[0].mxu0 %v449
        %v1061 = vpop.f32.mrb[0].mxu0
        %v1062 = vadd.f32 %v853, %v1061
        %v1063 = vpop.f32.mrb[0].mxu0
        %v1064 = vpop.f32.mrb[0].mxu0
        %v1065 = vadd.f32 %v856, %v1064
        %v1066 = vpop.f32.mrb[0].mxu0
        %1067 = vmatprep.mubr.bf16.mxu0 0
        %1068 = vmatmul.mubr.bf16.gmra.mrb[0].mxu0 %v450
        %v1069 = vpop.f32.mrb[0].mxu0
        %v1070 = vadd.f32 %v861, %v1069
        %v1071 = vpop.f32.mrb[0].mxu0
        %v1072 = vpop.f32.mrb[0].mxu0
        %v1073 = vadd.f32 %v864, %v1072
        %v1074 = vpop.f32.mrb[0].mxu0
        %1075 = vmatprep.mubr.bf16.mxu0 0
        %1076 = vmatmul.mubr.bf16.gmra.mrb[0].mxu0 %v451
        %v1077 = vpop.f32.mrb[0].mxu0
        %v1078 = vadd.f32 %v869, %v1077
        %v1079 = vpop.f32.mrb[0].mxu0
        %v1080 = vpop.f32.mrb[0].mxu0
        %v1081 = vadd.f32 %v872, %v1080
        %v1082 = vpop.f32.mrb[0].mxu0
        %1083 = vmatprep.mubr.bf16.mxu0 0
        %1084 = vmatmul.mubr.bf16.gmra.mrb[0].mxu0 %v452
        %v1085 = vpop.f32.mrb[0].mxu0
        %v1086 = vadd.f32 %v877, %v1085
        %v1087 = vpop.f32.mrb[0].mxu0
        %v1088 = vpop.f32.mrb[0].mxu0
        %v1089 = vadd.f32 %v880, %v1088
        %v1090 = vpop.f32.mrb[0].mxu0
        %1091 = vmatprep.mubr.bf16.mxu0 0
        %1092 = vmatmul.mubr.bf16.gmra.mrb[0].mxu0 %v453
        %v1093 = vpop.f32.mrb[0].mxu0
        %v1094 = vadd.f32 %v885, %v1093
        %v1095 = vpop.f32.mrb[0].mxu0
        %v1096 = vpop.f32.mrb[0].mxu0
        %v1097 = vadd.f32 %v888, %v1096
        %v1098 = vpop.f32.mrb[0].mxu0
        %1099 = vmatprep.mubr.bf16.mxu0 0
        %1100 = vmatmul.mubr.bf16.gmra.mrb[0].mxu0 %v454
        %v1101 = vpop.f32.mrb[0].mxu0
        %v1102 = vadd.f32 %v893, %v1101
        %v1103 = vpop.f32.mrb[0].mxu0
        %v1104 = vpop.f32.mrb[0].mxu0
        %v1105 = vadd.f32 %v896, %v1104
        %v1106 = vpop.f32.mrb[0].mxu0
        %1107 = vmatprep.mubr.bf16.mxu0 0
        %1108 = vmatmul.mubr.bf16.gmra.mrb[0].mxu0 %v455
        %v1109 = vpop.f32.mrb[0].mxu0
        %v1110 = vadd.f32 %v901, %v1109
        %v1111 = vpop.f32.mrb[0].mxu0
        %v1112 = vpop.f32.mrb[0].mxu0
        %v1113 = vadd.f32 %v904, %v1112
        %v1114 = vpop.f32.mrb[0].mxu0
        %1115 = vmatprep.mubr.bf16.mxu0 0
        %1116 = vmatmul.mubr.bf16.gmra.mrb[0].mxu0 %v456
        %v1117 = vpop.f32.mrb[0].mxu0
        %v1118 = vadd.f32 %v909, %v1117
        %v1119 = vpop.f32.mrb[0].mxu0
        %v1120 = vpop.f32.mrb[0].mxu0
        %v1121 = vadd.f32 %v912, %v1120
        %v1122 = vpop.f32.mrb[0].mxu0
        %1123 = vmatprep.mubr.bf16.mxu0 0
        %1124 = vmatmul.mubr.bf16.gmra.mrb[0].mxu0 %v457
        %v1125 = vpop.f32.mrb[0].mxu0
        %v1126 = vadd.f32 %v917, %v1125
        %v1127 = vpop.f32.mrb[0].mxu0
        %v1128 = vpop.f32.mrb[0].mxu0
        %v1129 = vadd.f32 %v920, %v1128
        %v1130 = vpop.f32.mrb[0].mxu0
        %1131 = vdwg.mxu0
        %v1132 = vld [vmem:[%s3] sm:$0xf]
        %v1133 = vld [vmem:[%s3 + $0x4] sm:$0xf]
        %v1134 = vld [vmem:[%s3 + $0x8] sm:$0xf]
        %v1135 = vld [vmem:[%s3 + $0xc] sm:$0xf]
        %v1136 = vld [vmem:[%s3 + $0x10] sm:$0xf]
        %v1137 = vld [vmem:[%s3 + $0x14] sm:$0xf]
        %v1138 = vld [vmem:[%s3 + $0x18] sm:$0xf]
        %v1139 = vld [vmem:[%s3 + $0x1c] sm:$0xf]
        %v1140 = vld [vmem:[%s3 + $0x20] sm:$0xf]
        %v1141 = vld [vmem:[%s3 + $0x24] sm:$0xf]
        %v1142 = vld [vmem:[%s3 + $0x28] sm:$0xf]
        %v1143 = vld [vmem:[%s3 + $0x2c] sm:$0xf]
        %v1144 = vld [vmem:[%s3 + $0x30] sm:$0xf]
        %v1145 = vld [vmem:[%s3 + $0x34] sm:$0xf]
        %v1146 = vld [vmem:[%s3 + $0x38] sm:$0xf]
        %v1147 = vld [vmem:[%s3 + $0x3c] sm:$0xf]
        %v1148 = vsub.s32 %v200, 256
        %v1149 = vsub.s32 %v201, 256
        %v1150 = vsub.s32 %v202, 256
        %v1151 = vsub.s32 %v203, 256
        %v1152 = vsub.s32 %v204, 256
        %v1153 = vsub.s32 %v205, 256
        %v1154 = vsub.s32 %v206, 256
        %v1155 = vsub.s32 %v207, 256
        %v1156 = vsub.s32 %v208, 256
        %v1157 = vsub.s32 %v209, 256
        %v1158 = vsub.s32 %v210, 256
        %v1159 = vsub.s32 %v211, 256
        %v1160 = vsub.s32 %v212, 256
        %v1161 = vsub.s32 %v213, 256
        %v1162 = vsub.s32 %v214, 256
        %v1163 = vsub.s32 %v215, 256
        %v1164 = vsub.s32 %v216, 256
        %v1165 = vsub.s32 %v217, 256
        %v1166 = vsub.s32 %v218, 256
        %v1167 = vsub.s32 %v219, 256
        %v1168 = vsub.s32 %v220, 256
        %v1169 = vsub.s32 %v221, 256
        %v1170 = vsub.s32 %v222, 256
        %v1171 = vsub.s32 %v223, 256
        %v1172 = vsub.s32 %v224, 256
        %v1173 = vsub.s32 %v225, 256
        %v1174 = vsub.s32 %v226, 256
        %v1175 = vsub.s32 %v227, 256
        %v1176 = vsub.s32 %v228, 256
        %v1177 = vsub.s32 %v229, 256
        %v1178 = vsub.s32 %v230, 256
        %v1179 = vsub.s32 %v231, 256
        %1180 = vset.pattern.permute.xlu0 0
        %1181 = vperm.xlu0 %1180, %v1148
        %v1182 = vpop.permute.xlu0 %1181
        %1183 = vset.pattern.permute.xlu0 0
        %1184 = vperm.xlu0 %1183, %v1149
        %v1185 = vpop.permute.xlu0 %1184
        %1186 = vset.pattern.permute.xlu0 0
        %1187 = vperm.xlu0 %1186, %v1150
        %v1188 = vpop.permute.xlu0 %1187
        %1189 = vset.pattern.permute.xlu0 0
        %1190 = vperm.xlu0 %1189, %v1151
        %v1191 = vpop.permute.xlu0 %1190
        %1192 = vset.pattern.permute.xlu0 0
        %1193 = vperm.xlu0 %1192, %v1152
        %v1194 = vpop.permute.xlu0 %1193
        %1195 = vset.pattern.permute.xlu0 0
        %1196 = vperm.xlu0 %1195, %v1153
        %v1197 = vpop.permute.xlu0 %1196
        %1198 = vset.pattern.permute.xlu0 0
        %1199 = vperm.xlu0 %1198, %v1154
        %v1200 = vpop.permute.xlu0 %1199
        %1201 = vset.pattern.permute.xlu0 0
        %1202 = vperm.xlu0 %1201, %v1155
        %v1203 = vpop.permute.xlu0 %1202
        %1204 = vset.pattern.permute.xlu0 0
        %1205 = vperm.xlu0 %1204, %v1156
        %v1206 = vpop.permute.xlu0 %1205
        %1207 = vset.pattern.permute.xlu0 0
        %1208 = vperm.xlu0 %1207, %v1157
        %v1209 = vpop.permute.xlu0 %1208
        %1210 = vset.pattern.permute.xlu0 0
        %1211 = vperm.xlu0 %1210, %v1158
        %v1212 = vpop.permute.xlu0 %1211
        %1213 = vset.pattern.permute.xlu0 0
        %1214 = vperm.xlu0 %1213, %v1159
        %v1215 = vpop.permute.xlu0 %1214
        %1216 = vset.pattern.permute.xlu0 0
        %1217 = vperm.xlu0 %1216, %v1160
        %v1218 = vpop.permute.xlu0 %1217
        %1219 = vset.pattern.permute.xlu0 0
        %1220 = vperm.xlu0 %1219, %v1161
        %v1221 = vpop.permute.xlu0 %1220
        %1222 = vset.pattern.permute.xlu0 0
        %1223 = vperm.xlu0 %1222, %v1162
        %v1224 = vpop.permute.xlu0 %1223
        %1225 = vset.pattern.permute.xlu0 0
        %1226 = vperm.xlu0 %1225, %v1163
        %v1227 = vpop.permute.xlu0 %1226
        %1228 = vset.pattern.permute.xlu0 0
        %1229 = vperm.xlu0 %1228, %v1164
        %v1230 = vpop.permute.xlu0 %1229
        %1231 = vset.pattern.permute.xlu0 0
        %1232 = vperm.xlu0 %1231, %v1165
        %v1233 = vpop.permute.xlu0 %1232
        %1234 = vset.pattern.permute.xlu0 0
        %1235 = vperm.xlu0 %1234, %v1166
        %v1236 = vpop.permute.xlu0 %1235
        %1237 = vset.pattern.permute.xlu0 0
        %1238 = vperm.xlu0 %1237, %v1167
        %v1239 = vpop.permute.xlu0 %1238
        %1240 = vset.pattern.permute.xlu0 0
        %1241 = vperm.xlu0 %1240, %v1168
        %v1242 = vpop.permute.xlu0 %1241
        %1243 = vset.pattern.permute.xlu0 0
        %1244 = vperm.xlu0 %1243, %v1169
        %v1245 = vpop.permute.xlu0 %1244
        %1246 = vset.pattern.permute.xlu0 0
        %1247 = vperm.xlu0 %1246, %v1170
        %v1248 = vpop.permute.xlu0 %1247
        %1249 = vset.pattern.permute.xlu0 0
        %1250 = vperm.xlu0 %1249, %v1171
        %v1251 = vpop.permute.xlu0 %1250
        %1252 = vset.pattern.permute.xlu0 0
        %1253 = vperm.xlu0 %1252, %v1172
        %v1254 = vpop.permute.xlu0 %1253
        %1255 = vset.pattern.permute.xlu0 0
        %1256 = vperm.xlu0 %1255, %v1173
        %v1257 = vpop.permute.xlu0 %1256
        %1258 = vset.pattern.permute.xlu0 0
        %1259 = vperm.xlu0 %1258, %v1174
        %v1260 = vpop.permute.xlu0 %1259
        %1261 = vset.pattern.permute.xlu0 0
        %1262 = vperm.xlu0 %1261, %v1175
        %v1263 = vpop.permute.xlu0 %1262
        %1264 = vset.pattern.permute.xlu0 0
        %1265 = vperm.xlu0 %1264, %v1176
        %v1266 = vpop.permute.xlu0 %1265
        %1267 = vset.pattern.permute.xlu0 0
        %1268 = vperm.xlu0 %1267, %v1177
        %v1269 = vpop.permute.xlu0 %1268
        %1270 = vset.pattern.permute.xlu0 0
        %1271 = vperm.xlu0 %1270, %v1178
        %v1272 = vpop.permute.xlu0 %1271
        %1273 = vset.pattern.permute.xlu0 0
        %1274 = vperm.xlu0 %1273, %v1179
        %v1275 = vpop.permute.xlu0 %1274
        %vm1276 = vcmp.eq.s32.totalorder %v1182, %v233
        %vm1277 = vcmp.eq.s32.totalorder %v1185, %v233
        %vm1278 = vcmp.eq.s32.totalorder %v1188, %v233
        %vm1279 = vcmp.eq.s32.totalorder %v1191, %v233
        %vm1280 = vcmp.eq.s32.totalorder %v1194, %v233
        %vm1281 = vcmp.eq.s32.totalorder %v1197, %v233
        %vm1282 = vcmp.eq.s32.totalorder %v1200, %v233
        %vm1283 = vcmp.eq.s32.totalorder %v1203, %v233
        %vm1284 = vcmp.eq.s32.totalorder %v1206, %v233
        %vm1285 = vcmp.eq.s32.totalorder %v1209, %v233
        %vm1286 = vcmp.eq.s32.totalorder %v1212, %v233
        %vm1287 = vcmp.eq.s32.totalorder %v1215, %v233
        %vm1288 = vcmp.eq.s32.totalorder %v1218, %v233
        %vm1289 = vcmp.eq.s32.totalorder %v1221, %v233
        %vm1290 = vcmp.eq.s32.totalorder %v1224, %v233
        %vm1291 = vcmp.eq.s32.totalorder %v1227, %v233
        %vm1292 = vcmp.eq.s32.totalorder %v1230, %v233
        %vm1293 = vcmp.eq.s32.totalorder %v1233, %v233
        %vm1294 = vcmp.eq.s32.totalorder %v1236, %v233
        %vm1295 = vcmp.eq.s32.totalorder %v1239, %v233
        %vm1296 = vcmp.eq.s32.totalorder %v1242, %v233
        %vm1297 = vcmp.eq.s32.totalorder %v1245, %v233
        %vm1298 = vcmp.eq.s32.totalorder %v1248, %v233
        %vm1299 = vcmp.eq.s32.totalorder %v1251, %v233
        %vm1300 = vcmp.eq.s32.totalorder %v1254, %v233
        %vm1301 = vcmp.eq.s32.totalorder %v1257, %v233
        %vm1302 = vcmp.eq.s32.totalorder %v1260, %v233
        %vm1303 = vcmp.eq.s32.totalorder %v1263, %v233
        %vm1304 = vcmp.eq.s32.totalorder %v1266, %v233
        %vm1305 = vcmp.eq.s32.totalorder %v1269, %v233
        %vm1306 = vcmp.eq.s32.totalorder %v1272, %v233
        %vm1307 = vcmp.eq.s32.totalorder %v1275, %v233
        %v1308 = vsel %vm1276, 1, 0
        %v1309 = vsel %vm1277, 1, 0
        %v1310 = vsel %vm1278, 1, 0
        %v1311 = vsel %vm1279, 1, 0
        %v1312 = vsel %vm1280, 1, 0
        %v1313 = vsel %vm1281, 1, 0
        %v1314 = vsel %vm1282, 1, 0
        %v1315 = vsel %vm1283, 1, 0
        %v1316 = vsel %vm1284, 1, 0
        %v1317 = vsel %vm1285, 1, 0
        %v1318 = vsel %vm1286, 1, 0
        %v1319 = vsel %vm1287, 1, 0
        %v1320 = vsel %vm1288, 1, 0
        %v1321 = vsel %vm1289, 1, 0
        %v1322 = vsel %vm1290, 1, 0
        %v1323 = vsel %vm1291, 1, 0
        %v1324 = vsel %vm1292, 1, 0
        %v1325 = vsel %vm1293, 1, 0
        %v1326 = vsel %vm1294, 1, 0
        %v1327 = vsel %vm1295, 1, 0
        %v1328 = vsel %vm1296, 1, 0
        %v1329 = vsel %vm1297, 1, 0
        %v1330 = vsel %vm1298, 1, 0
        %v1331 = vsel %vm1299, 1, 0
        %v1332 = vsel %vm1300, 1, 0
        %v1333 = vsel %vm1301, 1, 0
        %v1334 = vsel %vm1302, 1, 0
        %v1335 = vsel %vm1303, 1, 0
        %v1336 = vsel %vm1304, 1, 0
        %v1337 = vsel %vm1305, 1, 0
        %v1338 = vsel %vm1306, 1, 0
        %v1339 = vsel %vm1307, 1, 0
        %v1340 = vcvt.s32.f32 %v1308
        %v1341 = vcvt.s32.f32 %v1309
        %v1342 = vcvt.s32.f32 %v1310
        %v1343 = vcvt.s32.f32 %v1311
        %v1344 = vcvt.s32.f32 %v1312
        %v1345 = vcvt.s32.f32 %v1313
        %v1346 = vcvt.s32.f32 %v1314
        %v1347 = vcvt.s32.f32 %v1315
        %v1348 = vcvt.s32.f32 %v1316
        %v1349 = vcvt.s32.f32 %v1317
        %v1350 = vcvt.s32.f32 %v1318
        %v1351 = vcvt.s32.f32 %v1319
        %v1352 = vcvt.s32.f32 %v1320
        %v1353 = vcvt.s32.f32 %v1321
        %v1354 = vcvt.s32.f32 %v1322
        %v1355 = vcvt.s32.f32 %v1323
        %v1356 = vcvt.s32.f32 %v1324
        %v1357 = vcvt.s32.f32 %v1325
        %v1358 = vcvt.s32.f32 %v1326
        %v1359 = vcvt.s32.f32 %v1327
        %v1360 = vcvt.s32.f32 %v1328
        %v1361 = vcvt.s32.f32 %v1329
        %v1362 = vcvt.s32.f32 %v1330
        %v1363 = vcvt.s32.f32 %v1331
        %v1364 = vcvt.s32.f32 %v1332
        %v1365 = vcvt.s32.f32 %v1333
        %v1366 = vcvt.s32.f32 %v1334
        %v1367 = vcvt.s32.f32 %v1335
        %v1368 = vcvt.s32.f32 %v1336
        %v1369 = vcvt.s32.f32 %v1337
        %v1370 = vcvt.s32.f32 %v1338
        %v1371 = vcvt.s32.f32 %v1339
        %v1372 = vpack.c.bf16 %v1341, %v1340
        %v1373 = vpack.c.bf16 %v1343, %v1342
        %v1374 = vpack.c.bf16 %v1345, %v1344
        %v1375 = vpack.c.bf16 %v1347, %v1346
        %v1376 = vpack.c.bf16 %v1349, %v1348
        %v1377 = vpack.c.bf16 %v1351, %v1350
        %v1378 = vpack.c.bf16 %v1353, %v1352
        %v1379 = vpack.c.bf16 %v1355, %v1354
        %v1380 = vpack.c.bf16 %v1357, %v1356
        %v1381 = vpack.c.bf16 %v1359, %v1358
        %v1382 = vpack.c.bf16 %v1361, %v1360
        %v1383 = vpack.c.bf16 %v1363, %v1362
        %v1384 = vpack.c.bf16 %v1365, %v1364
        %v1385 = vpack.c.bf16 %v1367, %v1366
        %v1386 = vpack.c.bf16 %v1369, %v1368
        %v1387 = vpack.c.bf16 %v1371, %v1370
        %v1404 = vunpack.c.l.b16 %v1132
        %v1405 = vunpack.c.l.b16 %v1133
        %v1406 = vunpack.c.l.b16 %v1134
        %v1407 = vunpack.c.l.b16 %v1135
        %v1408 = vunpack.c.l.b16 %v1136
        %v1409 = vunpack.c.l.b16 %v1137
        %v1410 = vunpack.c.l.b16 %v1138
        %v1411 = vunpack.c.l.b16 %v1139
        %v1412 = vunpack.c.l.b16 %v1140
        %v1413 = vunpack.c.l.b16 %v1141
        %v1414 = vunpack.c.l.b16 %v1142
        %v1415 = vunpack.c.l.b16 %v1143
        %v1416 = vunpack.c.l.b16 %v1144
        %v1417 = vunpack.c.l.b16 %v1145
        %v1418 = vunpack.c.l.b16 %v1146
        %v1419 = vunpack.c.l.b16 %v1147
        %v1420 = vpack.c.b16 %v1405, %v1404
        %v1421 = vpack.c.b16 %v1407, %v1406
        %v1422 = vpack.c.b16 %v1409, %v1408
        %v1423 = vpack.c.b16 %v1411, %v1410
        %v1424 = vpack.c.b16 %v1413, %v1412
        %v1425 = vpack.c.b16 %v1415, %v1414
        %v1426 = vpack.c.b16 %v1417, %v1416
        %v1427 = vpack.c.b16 %v1419, %v1418
        %1436 = vmatprep.subr.bf16.mxu0 0
        %1437 = vmatpush1.bf16.msra.mxu0 %v1420
        %1438 = vmatprep.subr.bf16.mxu0 0
        %1439 = vmatpush1.bf16.msra.mxu0 %v1421
        %1440 = vmatprep.subr.bf16.mxu0 0
        %1441 = vmatpush1.bf16.msra.mxu0 %v1422
        %1442 = vmatprep.subr.bf16.mxu0 0
        %1443 = vmatpush1.bf16.msra.mxu0 %v1423
        %1444 = vmatprep.subr.bf16.mxu0 0
        %1445 = vmatpush1.bf16.msra.mxu0 %v1424
        %1446 = vmatprep.subr.bf16.mxu0 0
        %1447 = vmatpush1.bf16.msra.mxu0 %v1425
        %1448 = vmatprep.subr.bf16.mxu0 0
        %1449 = vmatpush1.bf16.msra.mxu0 %v1426
        %1450 = vmatprep.subr.bf16.mxu0 0
        %1451 = vmatpush1.bf16.msra.mxu0 %v1427
        %1452 = vmatprep.subr.bf16.mxu0 0
        %1453 = vmatpush1.bf16.msra.mxu0 0
        %1454 = vmatprep.subr.bf16.mxu0 0
        %1455 = vmatpush1.bf16.msra.mxu0 0
        %1456 = vmatprep.subr.bf16.mxu0 0
        %1457 = vmatpush1.bf16.msra.mxu0 0
        %1458 = vmatprep.subr.bf16.mxu0 0
        %1459 = vmatpush1.bf16.msra.mxu0 0
        %1460 = vmatprep.subr.bf16.mxu0 0
        %1461 = vmatpush1.bf16.msra.mxu0 0
        %1462 = vmatprep.subr.bf16.mxu0 0
        %1463 = vmatpush1.bf16.msra.mxu0 0
        %1464 = vmatprep.subr.bf16.mxu0 0
        %1465 = vmatpush1.bf16.msra.mxu0 0
        %1466 = vmatprep.subr.bf16.mxu0 0
        %1467 = vmatpush1.bf16.msra.mxu0 0
        %1468 = vmatprep.mubr.bf16.mxu0 0
        %1469 = vmatmul.mubr.bf16.gmra.mrb[0].mxu0 %v1372
        %v1470 = vpop.f32.mrb[0].mxu0
        %v1471 = vadd.f32 0.0, %v1470
        %v1472 = vpop.f32.mrb[0].mxu0
        %v1473 = vpop.f32.mrb[0].mxu0
        %v1474 = vadd.f32 0.0, %v1473
        %v1475 = vpop.f32.mrb[0].mxu0
        %1476 = vmatprep.mubr.bf16.mxu0 0
        %1477 = vmatmul.mubr.bf16.gmra.mrb[0].mxu0 %v1373
        %v1478 = vpop.f32.mrb[0].mxu0
        %v1479 = vadd.f32 0.0, %v1478
        %v1480 = vpop.f32.mrb[0].mxu0
        %v1481 = vpop.f32.mrb[0].mxu0
        %v1482 = vadd.f32 0.0, %v1481
        %v1483 = vpop.f32.mrb[0].mxu0
        %1484 = vmatprep.mubr.bf16.mxu0 0
        %1485 = vmatmul.mubr.bf16.gmra.mrb[0].mxu0 %v1374
        %v1486 = vpop.f32.mrb[0].mxu0
        %v1487 = vadd.f32 0.0, %v1486
        %v1488 = vpop.f32.mrb[0].mxu0
        %v1489 = vpop.f32.mrb[0].mxu0
        %v1490 = vadd.f32 0.0, %v1489
        %v1491 = vpop.f32.mrb[0].mxu0
        %1492 = vmatprep.mubr.bf16.mxu0 0
        %1493 = vmatmul.mubr.bf16.gmra.mrb[0].mxu0 %v1375
        %v1494 = vpop.f32.mrb[0].mxu0
        %v1495 = vadd.f32 0.0, %v1494
        %v1496 = vpop.f32.mrb[0].mxu0
        %v1497 = vpop.f32.mrb[0].mxu0
        %v1498 = vadd.f32 0.0, %v1497
        %v1499 = vpop.f32.mrb[0].mxu0
        %1500 = vmatprep.mubr.bf16.mxu0 0
        %1501 = vmatmul.mubr.bf16.gmra.mrb[0].mxu0 %v1376
        %v1502 = vpop.f32.mrb[0].mxu0
        %v1503 = vadd.f32 0.0, %v1502
        %v1504 = vpop.f32.mrb[0].mxu0
        %v1505 = vpop.f32.mrb[0].mxu0
        %v1506 = vadd.f32 0.0, %v1505
        %v1507 = vpop.f32.mrb[0].mxu0
        %1508 = vmatprep.mubr.bf16.mxu0 0
        %1509 = vmatmul.mubr.bf16.gmra.mrb[0].mxu0 %v1377
        %v1510 = vpop.f32.mrb[0].mxu0
        %v1511 = vadd.f32 0.0, %v1510
        %v1512 = vpop.f32.mrb[0].mxu0
        %v1513 = vpop.f32.mrb[0].mxu0
        %v1514 = vadd.f32 0.0, %v1513
        %v1515 = vpop.f32.mrb[0].mxu0
        %1516 = vmatprep.mubr.bf16.mxu0 0
        %1517 = vmatmul.mubr.bf16.gmra.mrb[0].mxu0 %v1378
        %v1518 = vpop.f32.mrb[0].mxu0
        %v1519 = vadd.f32 0.0, %v1518
        %v1520 = vpop.f32.mrb[0].mxu0
        %v1521 = vpop.f32.mrb[0].mxu0
        %v1522 = vadd.f32 0.0, %v1521
        %v1523 = vpop.f32.mrb[0].mxu0
        %1524 = vmatprep.mubr.bf16.mxu0 0
        %1525 = vmatmul.mubr.bf16.gmra.mrb[0].mxu0 %v1379
        %v1526 = vpop.f32.mrb[0].mxu0
        %v1527 = vadd.f32 0.0, %v1526
        %v1528 = vpop.f32.mrb[0].mxu0
        %v1529 = vpop.f32.mrb[0].mxu0
        %v1530 = vadd.f32 0.0, %v1529
        %v1531 = vpop.f32.mrb[0].mxu0
        %1532 = vmatprep.mubr.bf16.mxu0 0
        %1533 = vmatmul.mubr.bf16.gmra.mrb[0].mxu0 %v1380
        %v1534 = vpop.f32.mrb[0].mxu0
        %v1535 = vadd.f32 0.0, %v1534
        %v1536 = vpop.f32.mrb[0].mxu0
        %v1537 = vpop.f32.mrb[0].mxu0
        %v1538 = vadd.f32 0.0, %v1537
        %v1539 = vpop.f32.mrb[0].mxu0
        %1540 = vmatprep.mubr.bf16.mxu0 0
        %1541 = vmatmul.mubr.bf16.gmra.mrb[0].mxu0 %v1381
        %v1542 = vpop.f32.mrb[0].mxu0
        %v1543 = vadd.f32 0.0, %v1542
        %v1544 = vpop.f32.mrb[0].mxu0
        %v1545 = vpop.f32.mrb[0].mxu0
        %v1546 = vadd.f32 0.0, %v1545
        %v1547 = vpop.f32.mrb[0].mxu0
        %1548 = vmatprep.mubr.bf16.mxu0 0
        %1549 = vmatmul.mubr.bf16.gmra.mrb[0].mxu0 %v1382
        %v1550 = vpop.f32.mrb[0].mxu0
        %v1551 = vadd.f32 0.0, %v1550
        %v1552 = vpop.f32.mrb[0].mxu0
        %v1553 = vpop.f32.mrb[0].mxu0
        %v1554 = vadd.f32 0.0, %v1553
        %v1555 = vpop.f32.mrb[0].mxu0
        %1556 = vmatprep.mubr.bf16.mxu0 0
        %1557 = vmatmul.mubr.bf16.gmra.mrb[0].mxu0 %v1383
        %v1558 = vpop.f32.mrb[0].mxu0
        %v1559 = vadd.f32 0.0, %v1558
        %v1560 = vpop.f32.mrb[0].mxu0
        %v1561 = vpop.f32.mrb[0].mxu0
        %v1562 = vadd.f32 0.0, %v1561
        %v1563 = vpop.f32.mrb[0].mxu0
        %1564 = vmatprep.mubr.bf16.mxu0 0
        %1565 = vmatmul.mubr.bf16.gmra.mrb[0].mxu0 %v1384
        %v1566 = vpop.f32.mrb[0].mxu0
        %v1567 = vadd.f32 0.0, %v1566
        %v1568 = vpop.f32.mrb[0].mxu0
        %v1569 = vpop.f32.mrb[0].mxu0
        %v1570 = vadd.f32 0.0, %v1569
        %v1571 = vpop.f32.mrb[0].mxu0
        %1572 = vmatprep.mubr.bf16.mxu0 0
        %1573 = vmatmul.mubr.bf16.gmra.mrb[0].mxu0 %v1385
        %v1574 = vpop.f32.mrb[0].mxu0
        %v1575 = vadd.f32 0.0, %v1574
        %v1576 = vpop.f32.mrb[0].mxu0
        %v1577 = vpop.f32.mrb[0].mxu0
        %v1578 = vadd.f32 0.0, %v1577
        %v1579 = vpop.f32.mrb[0].mxu0
        %1580 = vmatprep.mubr.bf16.mxu0 0
        %1581 = vmatmul.mubr.bf16.gmra.mrb[0].mxu0 %v1386
        %v1582 = vpop.f32.mrb[0].mxu0
        %v1583 = vadd.f32 0.0, %v1582
        %v1584 = vpop.f32.mrb[0].mxu0
        %v1585 = vpop.f32.mrb[0].mxu0
        %v1586 = vadd.f32 0.0, %v1585
        %v1587 = vpop.f32.mrb[0].mxu0
        %1588 = vmatprep.mubr.bf16.mxu0 0
        %1589 = vmatmul.mubr.bf16.gmra.mrb[0].mxu0 %v1387
        %v1590 = vpop.f32.mrb[0].mxu0
        %v1591 = vadd.f32 0.0, %v1590
        %v1592 = vpop.f32.mrb[0].mxu0
        %v1593 = vpop.f32.mrb[0].mxu0
        %v1594 = vadd.f32 0.0, %v1593
        %v1595 = vpop.f32.mrb[0].mxu0
        %1596 = vdwg.mxu0
        %v1597 = vadd.f32 %v1006, %v1471
        %v1598 = vadd.f32 %v1009, %v1474
        %v1599 = vadd.f32 %v1014, %v1479
        %v1600 = vadd.f32 %v1017, %v1482
        %v1601 = vadd.f32 %v1022, %v1487
        %v1602 = vadd.f32 %v1025, %v1490
        %v1603 = vadd.f32 %v1030, %v1495
        %v1604 = vadd.f32 %v1033, %v1498
        %v1605 = vadd.f32 %v1038, %v1503
        %v1606 = vadd.f32 %v1041, %v1506
        %v1607 = vadd.f32 %v1046, %v1511
        %v1608 = vadd.f32 %v1049, %v1514
        %v1609 = vadd.f32 %v1054, %v1519
        %v1610 = vadd.f32 %v1057, %v1522
        %v1611 = vadd.f32 %v1062, %v1527
        %v1612 = vadd.f32 %v1065, %v1530
        %v1613 = vadd.f32 %v1070, %v1535
        %v1614 = vadd.f32 %v1073, %v1538
        %v1615 = vadd.f32 %v1078, %v1543
        %v1616 = vadd.f32 %v1081, %v1546
        %v1617 = vadd.f32 %v1086, %v1551
        %v1618 = vadd.f32 %v1089, %v1554
        %v1619 = vadd.f32 %v1094, %v1559
        %v1620 = vadd.f32 %v1097, %v1562
        %v1621 = vadd.f32 %v1102, %v1567
        %v1622 = vadd.f32 %v1105, %v1570
        %v1623 = vadd.f32 %v1110, %v1575
        %v1624 = vadd.f32 %v1113, %v1578
        %v1625 = vadd.f32 %v1118, %v1583
        %v1626 = vadd.f32 %v1121, %v1586
        %v1627 = vadd.f32 %v1126, %v1591
        %v1628 = vadd.f32 %v1129, %v1594
        %1629 = vst [vmem:[%s191] sm:$0xff] %v1597
        %1630 = vst [vmem:[%s191 + $0x8] sm:$0xff] %v1598
        %1631 = vst [vmem:[%s191 + $0x10] sm:$0xff] %v1599
        %1632 = vst [vmem:[%s191 + $0x18] sm:$0xff] %v1600
        %1633 = vst [vmem:[%s191 + $0x20] sm:$0xff] %v1601
        %1634 = vst [vmem:[%s191 + $0x28] sm:$0xff] %v1602
        %1635 = vst [vmem:[%s191 + $0x30] sm:$0xff] %v1603
        %1636 = vst [vmem:[%s191 + $0x38] sm:$0xff] %v1604
        %1637 = vst [vmem:[%s191 + $0x40] sm:$0xff] %v1605
        %1638 = vst [vmem:[%s191 + $0x48] sm:$0xff] %v1606
        %1639 = vst [vmem:[%s191 + $0x50] sm:$0xff] %v1607
        %1640 = vst [vmem:[%s191 + $0x58] sm:$0xff] %v1608
        %1641 = vst [vmem:[%s191 + $0x60] sm:$0xff] %v1609
        %1642 = vst [vmem:[%s191 + $0x68] sm:$0xff] %v1610
        %1643 = vst [vmem:[%s191 + $0x70] sm:$0xff] %v1611
        %1644 = vst [vmem:[%s191 + $0x78] sm:$0xff] %v1612
        %1645 = vst [vmem:[%s191 + $0x80] sm:$0xff] %v1613
        %1646 = vst [vmem:[%s191 + $0x88] sm:$0xff] %v1614
        %1647 = vst [vmem:[%s191 + $0x90] sm:$0xff] %v1615
        %1648 = vst [vmem:[%s191 + $0x98] sm:$0xff] %v1616
        %1649 = vst [vmem:[%s191 + $0xa0] sm:$0xff] %v1617
        %1650 = vst [vmem:[%s191 + $0xa8] sm:$0xff] %v1618
        %1651 = vst [vmem:[%s191 + $0xb0] sm:$0xff] %v1619
        %1652 = vst [vmem:[%s191 + $0xb8] sm:$0xff] %v1620
        %1653 = vst [vmem:[%s191 + $0xc0] sm:$0xff] %v1621
        %1654 = vst [vmem:[%s191 + $0xc8] sm:$0xff] %v1622
        %1655 = vst [vmem:[%s191 + $0xd0] sm:$0xff] %v1623
        %1656 = vst [vmem:[%s191 + $0xd8] sm:$0xff] %v1624
        %1657 = vst [vmem:[%s191 + $0xe0] sm:$0xff] %v1625
        %1658 = vst [vmem:[%s191 + $0xe8] sm:$0xff] %v1626
        %1659 = vst [vmem:[%s191 + $0xf0] sm:$0xff] %v1627
        %1660 = vst [vmem:[%s191 + $0xf8] sm:$0xff] %v1628
        %s1661 = sand.u32 %s115, 1
        %s1662 = scalar_lea.sflag [#allocation3], %s1661
        %s1663 = sand.u32 %s115, 1
        %s1664 = smul.addr %s1663, 256
        %s1665 = scalar_lea.vmem [#allocation2], %s1664
        // Predicated region
        $region37: #{tpu_custom_call.1} parent=35 // pred_check
          %p1666 = pneg %p125
        $region38: #{tpu_custom_call.1} parent=35 // pred_check_branch
          %1668 = sbr.rel (%p1666) target = $region40
        $region39: #{tpu_custom_call.1} parent=35 // pred_region
          %s1669 = smul.u32 32, %s18
          %s1671 = ssub.s32 4096, 4096
          %1672 = vsyncadd %s1662, %s1671
          %s1673 = smul.addr %s1669, 128
          %s1674 = scalar_lea.hbm %s4, %s1673
          %s1675 = sshll.u32 %s1665, 4
          %s1676 = int_to_ptr.vmem [resolvable:$true] %s1675
          %1681 = dma.vmem_to_hbm [thread:$0]  %s1676, 4096, %s1674, %s1662, 128, 128, 8
        $region40: #{tpu_custom_call.1} parent=35 // pred_fallthru
          _
      $region36: #{tpu_custom_call.1} parent=5 // pred_fallthru
        _
      %p1682 = scmp.le.s32.totalorder 2, %s13
      // Predicated region
      $region41: #{tpu_custom_call.1} parent=5 // pred_check
        %p1683 = pneg %p1682
      $region42: #{tpu_custom_call.1} parent=5 // pred_check_branch
        %1685 = sbr.rel (%p1683) target = $region44
      $region43: #{tpu_custom_call.1} parent=5 // pred_region
        %s1686 = ssub.s32 %s13, 2
        // Predicated region
        $region45: #{tpu_custom_call.1} parent=43 // pred_check
          %p1687 = pneg %p131
        $region46: #{tpu_custom_call.1} parent=43 // pred_check_branch
          %1689 = sbr.rel (%p1687) target = $region48
        $region47: #{tpu_custom_call.1} parent=43 // pred_region
          %s1690 = sand.u32 %s116, 1
          %s1691 = scalar_lea.sflag [#allocation3], %s1690
          %s1692 = sand.u32 %s116, 1
          %s1693 = smul.addr %s1692, 256
          %s1694 = scalar_lea.vmem [#allocation2], %s1693
          %1695 = dma.done %s1691, 4096
        $region48: #{tpu_custom_call.1} parent=43 // pred_fallthru
          _
      $region44: #{tpu_custom_call.1} parent=5 // pred_fallthru
        _
    $region6: #{tpu_custom_call.1} parent=1 // loop_footer
      %s17 = sadd.s32 1, %s13
    $region7: #{tpu_custom_call.1} parent=1 // loop_footer_branch
      %12 = sbr.rel target = $region3
    $region8: #{tpu_custom_call.1} parent=1 // loop_exit
      _
    %1696 = vsyncpa [#allocation3], 1
    %s1697 = scalar_lea.sflag [#allocation3], 1
    %1698 = vsyncpa %s1697, 1

</llo_original>
